<compile_context>
chip_gen: v7x
topology: tpu7x:2x2x1
jax: 0.10.0
libtpu: 0.0.40
codegen_flags: <defaults>
</compile_context>

<pallas_src>
import functools
import math

import jax
import jax.numpy as jnp
from jax import lax
from jax.experimental import pallas as pl
from jax.experimental.pallas import tpu as pltpu

EPS = 1e-5          # LayerNormalization epsilon
NEG_MASK = -1e30    # finite large-negative causal mask (not -inf)


def _gelu_tanh(x):
    # GPT-2 tanh-approximation GELU (kept in f32).
    return 0.5 * x * (1.0 + jnp.tanh(
        jnp.sqrt(2.0 / jnp.pi) * (x + 0.044715 * x * x * x)))


def _layernorm(h, gamma, beta):
    mean = jnp.mean(h, axis=-1, keepdims=True)
    var = jnp.mean((h - mean) ** 2, axis=-1, keepdims=True)  # unbiased=False
    return (h - mean) * lax.rsqrt(var + EPS) * gamma + beta


def gpt_block_kernel(n_heads, ffn_block,
                     xf_ref,
                     wq_ref, bq_ref, wk_ref, bk_ref, wv_ref, bv_ref,
                     wo_ref, bo_ref, w1_ref, b1_ref, w2_ref, b2_ref,
                     gamma_ref, beta_ref,
                     o_ref,
                     hf_vmem, k_vmem, v_vmem, m_vmem, l_vmem, acc_vmem):
    T, D = xf_ref.shape[1], xf_ref.shape[2]
    block_q = o_ref.shape[1]
    n_q = T // block_q
    H = n_heads
    hd = D // H
    cdt = wq_ref.dtype                    # matmul compute dtype (f32 or bf16)

    qi = pl.program_id(1)
    q_start = pl.multiple_of(qi * block_q, block_q)

    gamma = gamma_ref[...]                # (1, D), shared by both sub-layers
    beta = beta_ref[...]

    # ---- once per batch element (qi == 0): LN(x) and the K/V projections ---
    @pl.when(qi == 0)
    def _():
        wk = wk_ref[...]
        wv = wv_ref[...]
        bk = bk_ref[...]
        bv = bv_ref[...]
        for c in range(n_q):              # static chunk loop, full-width dots
            lo = c * block_q
            xc = xf_ref[0, lo:lo + block_q, :]
            hc = _layernorm(xc, gamma, beta).astype(cdt)
            hf_vmem[c] = hc
            k_vmem[c] = (jnp.dot(hc, wk, preferred_element_type=jnp.float32)
                         + bk).astype(cdt)
            v_vmem[c] = (jnp.dot(hc, wv, preferred_element_type=jnp.float32)
                         + bv).astype(cdt)

    # ---- sub-layer 1: causal MHA on this query tile -------------------------
    xq = xf_ref[0, pl.ds(q_start, block_q), :]      # residual input rows (f32)
    hq = hf_vmem[qi]                                 # cached LN'd query rows
    # Full-lane-width Q projection; 1/sqrt(hd) folded into wq/bq on the host.
    q_full = (jnp.dot(hq, wq_ref[...], preferred_element_type=jnp.float32)
              + bq_ref[...]).astype(cdt)             # (block_q, D)
    q_heads = [q_full[:, h * hd:(h + 1) * hd] for h in range(H)]

    m_vmem[...] = jnp.full(m_vmem.shape, -jnp.inf, jnp.float32)
    l_vmem[...] = jnp.zeros(l_vmem.shape, jnp.float32)
    acc_vmem[...] = jnp.zeros(acc_vmem.shape, jnp.float32)

    row_ids = q_start + lax.broadcasted_iota(jnp.int32, (block_q, block_q), 0)
    col_ids = lax.broadcasted_iota(jnp.int32, (block_q, block_q), 1)

    def kv_step(j, carry):
        k_j = k_vmem[j]                               # (block_q, D)
        v_j = v_vmem[j]
        causal = (j * block_q + col_ids) <= row_ids   # only bites on diag chunk
        for h in range(H):
            lo = h * hd
            s = lax.dot_general(q_heads[h], k_j[:, lo:lo + hd],
                                (((1,), (1,)), ((), ())),
                                preferred_element_type=jnp.float32)
            s = jnp.where(causal, s, NEG_MASK)
            m_prev = m_vmem[h]
            m_new = jnp.maximum(m_prev, jnp.max(s, axis=-1, keepdims=True))
            alpha = jnp.exp(m_prev - m_new)
            p = jnp.exp(s - m_new)
            l_vmem[h] = alpha * l_vmem[h] + jnp.sum(p, axis=-1, keepdims=True)
            acc_vmem[h] = alpha * acc_vmem[h] + jnp.dot(
                p.astype(cdt), v_j[:, lo:lo + hd],
                preferred_element_type=jnp.float32)
            m_vmem[h] = m_new
        return carry

    # Causal bound: only the first (qi + 1) KV chunks are ever touched.
    lax.fori_loop(0, qi + 1, kv_step, 0)

    # Deferred softmax normalization on the small (block_q, hd) contexts.
    # NOTE: approx reciprocal is fine for inference; use approx=False if this
    # kernel is reused for training / logit-sensitive paths.
    ctx_parts = [
        (acc_vmem[h] * pl.reciprocal(l_vmem[h], approx=True)).astype(cdt)
        for h in range(H)
    ]
    ctx = ctx_parts[0] if H == 1 else jnp.concatenate(ctx_parts, axis=-1)

    # Single full-depth (D) output projection.
    attn = jnp.dot(ctx, wo_ref[...],
                   preferred_element_type=jnp.float32) + bo_ref[...]
    # TODO(synk): nn.Dropout omitted (inference/eval semantics => identity).
    x1 = xq + attn

    # ---- sub-layer 2: shared LN -> FFN(GELU) -> residual --------------------
    # The PyTorch module reuses ONE LayerNormalization instance for both
    # sub-layers, so gamma/beta are intentionally shared here.
    h2 = _layernorm(x1, gamma, beta).astype(cdt)
    hid = w1_ref.shape[1]
    ff = jnp.zeros((block_q, D), jnp.float32)
    for c in range(hid // ffn_block):                 # FFN hidden dim chunked
        lo = c * ffn_block
        g = (jnp.dot(h2, w1_ref[:, lo:lo + ffn_block],
                     preferred_element_type=jnp.float32)
             + b1_ref[:, lo:lo + ffn_block])
        g = _gelu_tanh(g)
        ff = ff + jnp.dot(g.astype(cdt), w2_ref[lo:lo + ffn_block, :],
                          preferred_element_type=jnp.float32)
    ff = ff + b2_ref[...]
    o_ref[0] = (x1 + ff).astype(o_ref.dtype)


def _prepare_params(params, n_heads, compute_dtype):
    """Host-side (free) rearrangement into the kernel layout."""
    D = params["wq"].shape[0]
    hd = D // n_heads
    inv_sqrt_hd = 1.0 / math.sqrt(hd)
    cdt = compute_dtype
    f32 = jnp.float32
    return [
        (params["wq"] * inv_sqrt_hd).astype(cdt),             # scale folded
        (params["bq"] * inv_sqrt_hd).reshape(1, D).astype(f32),
        params["wk"].astype(cdt),
        params["bk"].reshape(1, D).astype(f32),
        params["wv"].astype(cdt),
        params["bv"].reshape(1, D).astype(f32),
        params["wo"].astype(cdt),
        params["bo"].reshape(1, D).astype(f32),
        params["w1"].astype(cdt),
        params["b1"].reshape(1, -1).astype(f32),
        params["w2"].astype(cdt),
        params["b2"].reshape(1, D).astype(f32),
        params["gamma"].reshape(1, D).astype(f32),
        params["beta"].reshape(1, D).astype(f32),
    ]


def gpt_transformer_block(x, params, n_heads, *, block_q=None, ffn_block=None,
                          compute_dtype=jnp.bfloat16, weight_buffering=None):
    """x: [B, T, D] float32.  Returns [B, T, D] float32."""
    B, T, D = x.shape
    assert D % n_heads == 0
    hd = D // n_heads
    hid = params["w1"].shape[1]

    if block_q is None:
        block_q = min(T, 256)
    assert T % block_q == 0 and block_q % 8 == 0
    n_q = T // block_q
    if ffn_block is None:
        ffn_block = min(hid, 512)
    assert hid % ffn_block == 0

    plist = _prepare_params(params, n_heads, compute_dtype)

    def const_spec(arr):
        nd = arr.ndim

        def idx(b, qi):
            return (0,) * nd

        if weight_buffering is None:
            return pl.BlockSpec(arr.shape, idx)
        # v7x: weight_buffering=1 stops double-buffering the resident weights.
        return pl.BlockSpec(arr.shape, idx,
                            pipeline_mode=pl.Buffered(weight_buffering))

    in_specs = [pl.BlockSpec((1, T, D), lambda b, qi: (b, 0, 0))]
    in_specs += [const_spec(p) for p in plist]
    out_spec = pl.BlockSpec((1, block_q, D), lambda b, qi: (b, qi, 0))

    cdt_size = jnp.dtype(compute_dtype).itemsize
    scratch_shapes = [
        pltpu.VMEM((n_q, block_q, D), compute_dtype),     # cached LN(x)
        pltpu.VMEM((n_q, block_q, D), compute_dtype),     # cached K
        pltpu.VMEM((n_q, block_q, D), compute_dtype),     # cached V
        pltpu.VMEM((n_heads, block_q, 1), jnp.float32),   # running max
        pltpu.VMEM((n_heads, block_q, 1), jnp.float32),   # running sum
        pltpu.VMEM((n_heads, block_q, hd), jnp.float32),  # running context
    ]

    # Generation-aware VMEM budget (64 MiB on v7x, 128 MiB on v5e/v6e).
    f32b = 4
    param_bytes = sum(int(p.size) * p.dtype.itemsize for p in plist)
    weight_copies = 1 if weight_buffering == 1 else 2
    scratch_bytes = 3 * T * D * cdt_size + n_heads * block_q * (hd + 2) * f32b
    io_bytes = (2 * T * D + 2 * block_q * D) * f32b + weight_copies * param_bytes
    act_bytes = f32b * (8 * block_q * D
                        + 4 * block_q * block_q
                        + 2 * block_q * ffn_block)
    est = io_bytes + scratch_bytes + act_bytes + (4 << 20)
    try:
        vmem_cap = int(pltpu.get_tpu_info().vmem_capacity_bytes)
    except Exception:
        vmem_cap = 64 << 20
    vmem_limit = int(min(max(est, 32 << 20), vmem_cap - (8 << 20)))

    kernel = functools.partial(gpt_block_kernel, n_heads, ffn_block)
    return pl.pallas_call(
        kernel,
        out_shape=jax.ShapeDtypeStruct((B, T, D), jnp.float32),
        grid=(B, n_q),
        in_specs=in_specs,
        out_specs=out_spec,
        scratch_shapes=scratch_shapes,
        compiler_params=pltpu.CompilerParams(
            # batch "parallel" (megacore); the query-tile axis must stay
            # "arbitrary": the K/V scratch cache is filled at qi == 0 and
            # reused for qi > 0 of the same batch element.
            dimension_semantics=("parallel", "arbitrary"),
            vmem_limit_bytes=vmem_limit),
    )(x, *plist)


def init_params(key, embed_dim, qkv_bias=True):
    D = embed_dim
    hid = 4 * D
    ks = jax.random.split(key, 14)
    s = 0.02
    zeros = lambda n: jnp.zeros((n,), jnp.float32)
    return {
        "wq": s * jax.random.normal(ks[0], (D, D), jnp.float32),
        "wk": s * jax.random.normal(ks[1], (D, D), jnp.float32),
        "wv": s * jax.random.normal(ks[2], (D, D), jnp.float32),
        "wo": s * jax.random.normal(ks[3], (D, D), jnp.float32),
        "w1": s * jax.random.normal(ks[4], (D, hid), jnp.float32),
        "w2": s * jax.random.normal(ks[5], (hid, D), jnp.float32),
        "bq": s * jax.random.normal(ks[6], (D,), jnp.float32) if qkv_bias else zeros(D),
        "bk": s * jax.random.normal(ks[7], (D,), jnp.float32) if qkv_bias else zeros(D),
        "bv": s * jax.random.normal(ks[8], (D,), jnp.float32) if qkv_bias else zeros(D),
        "bo": s * jax.random.normal(ks[9], (D,), jnp.float32),
        "b1": s * jax.random.normal(ks[10], (hid,), jnp.float32),
        "b2": s * jax.random.normal(ks[11], (D,), jnp.float32),
        "gamma": 1.0 + 0.1 * jax.random.normal(ks[12], (D,), jnp.float32),
        "beta": 0.1 * jax.random.normal(ks[13], (D,), jnp.float32),
    }


def reference_block(x, params, n_heads):
    """Pure-JAX f32 reference for correctness checking."""
    B, T, D = x.shape
    hd = D // n_heads

    def ln(h):
        m = jnp.mean(h, axis=-1, keepdims=True)
        v = jnp.mean((h - m) ** 2, axis=-1, keepdims=True)
        return (h - m) / jnp.sqrt(v + EPS) * params["gamma"] + params["beta"]

    h = ln(x)
    q = h @ params["wq"] + params["bq"]
    k = h @ params["wk"] + params["bk"]
    v = h @ params["wv"] + params["bv"]
    q = q.reshape(B, T, n_heads, hd).transpose(0, 2, 1, 3)
    k = k.reshape(B, T, n_heads, hd).transpose(0, 2, 1, 3)
    v = v.reshape(B, T, n_heads, hd).transpose(0, 2, 1, 3)
    s = jnp.einsum("bhqd,bhkd->bhqk", q, k) / jnp.sqrt(jnp.float32(hd))
    mask = jnp.tril(jnp.ones((T, T), bool))
    s = jnp.where(mask, s, -jnp.inf)
    p = jax.nn.softmax(s, axis=-1)
    ctx = jnp.einsum("bhqk,bhkd->bhqd", p, v).transpose(0, 2, 1, 3).reshape(B, T, D)
    x1 = x + (ctx @ params["wo"] + params["bo"])
    h2 = ln(x1)
    f = h2 @ params["w1"] + params["b1"]
    f = 0.5 * f * (1.0 + jnp.tanh(jnp.sqrt(2.0 / jnp.pi) * (f + 0.044715 * f ** 3)))
    f = f @ params["w2"] + params["b2"]
    return x1 + f


if __name__ == "__main__":
    key = jax.random.PRNGKey(0)
    kx, kp = jax.random.split(key)

    # cfg: embed_dim=32, context_length=8, n_heads=4, drop_rate=0.0, qkv_bias=True
    B, T, D, H = 2, 8, 32, 4
    x = jax.random.normal(kx, (B, T, D), jnp.float32)
    params = init_params(kp, D, qkv_bias=True)

    # 1) f32 path, single query tile.
    ref = jax.block_until_ready(reference_block(x, params, H))
    out = jax.block_until_ready(
        gpt_transformer_block(x, params, H, compute_dtype=jnp.float32))
    assert out.shape == (B, T, D)
    err = float(jnp.max(jnp.abs(out - ref)))
    assert err < 2e-3, f"f32 max err {err}"

    # 2) f32 path, longer sequence with 2 query tiles (exercises the per-batch
    #    K/V cache, dynamic causal KV-chunk loop, and global causal offsets).
    T2 = 16
    x2 = jax.random.normal(jax.random.fold_in(kx, 1), (B, T2, D), jnp.float32)
    ref2 = jax.block_until_ready(reference_block(x2, params, H))
    out2 = jax.block_until_ready(
        gpt_transformer_block(x2, params, H, block_q=8,
                              compute_dtype=jnp.float32))
    err2 = float(jnp.max(jnp.abs(out2 - ref2)))
    assert err2 < 2e-3, f"f32 tiled max err {err2}"

    # 3) default bf16 MXU path (bf16 weights + matmul operands, f32 accumulation).
    out3 = jax.block_until_ready(
        gpt_transformer_block(x2, params, H, block_q=8))
    err3 = float(jnp.max(jnp.abs(out3 - ref2)))
    assert err3 < 5e-2, f"bf16 max err {err3}"

    print("KERNEL_OK")
</pallas_src>

<mosaic_0001>
module attributes {stable_mosaic.version = 11 : i64} {
  func.func @gpt_block_kernel(%arg0: i32, %arg1: i32, %arg2: memref<1x8x32xf32, #tpu.memory_space<vmem>>, %arg3: memref<32x32xf32, #tpu.memory_space<vmem>>, %arg4: memref<1x32xf32, #tpu.memory_space<vmem>>, %arg5: memref<32x32xf32, #tpu.memory_space<vmem>>, %arg6: memref<1x32xf32, #tpu.memory_space<vmem>>, %arg7: memref<32x32xf32, #tpu.memory_space<vmem>>, %arg8: memref<1x32xf32, #tpu.memory_space<vmem>>, %arg9: memref<32x32xf32, #tpu.memory_space<vmem>>, %arg10: memref<1x32xf32, #tpu.memory_space<vmem>>, %arg11: memref<32x128xf32, #tpu.memory_space<vmem>>, %arg12: memref<1x128xf32, #tpu.memory_space<vmem>>, %arg13: memref<128x32xf32, #tpu.memory_space<vmem>>, %arg14: memref<1x32xf32, #tpu.memory_space<vmem>>, %arg15: memref<1x32xf32, #tpu.memory_space<vmem>>, %arg16: memref<1x32xf32, #tpu.memory_space<vmem>>, %arg17: memref<1x8x32xf32, #tpu.memory_space<vmem>>, %arg18: memref<1x8x32xf32, #tpu.memory_space<vmem>>, %arg19: memref<1x8x32xf32, #tpu.memory_space<vmem>>, %arg20: memref<1x8x32xf32, #tpu.memory_space<vmem>>, %arg21: memref<4x8x1xf32, #tpu.memory_space<vmem>>, %arg22: memref<4x8x1xf32, #tpu.memory_space<vmem>>, %arg23: memref<4x8x8xf32, #tpu.memory_space<vmem>>) attributes {dimension_semantics = [#tpu.dimension_semantics<parallel>, #tpu.dimension_semantics<arbitrary>], iteration_bounds = array<i64: 2, 1>, scalar_prefetch = 0 : i64, scratch_operands = 6 : i64, tpu.core_type = #tpu.core_type<tc>, window_params = [{transform_indices = @transform_0, window_bounds = array<i64: 1, 8, 32>}, {pipeline_mode = #tpu.pipeline_mode<synchronous>, transform_indices = @transform_1, window_bounds = array<i64: 32, 32>}, {pipeline_mode = #tpu.pipeline_mode<synchronous>, transform_indices = @transform_2, window_bounds = array<i64: 1, 32>}, {pipeline_mode = #tpu.pipeline_mode<synchronous>, transform_indices = @transform_3, window_bounds = array<i64: 32, 32>}, {pipeline_mode = #tpu.pipeline_mode<synchronous>, transform_indices = @transform_4, window_bounds = array<i64: 1, 32>}, {pipeline_mode = #tpu.pipeline_mode<synchronous>, transform_indices = @transform_5, window_bounds = array<i64: 32, 32>}, {pipeline_mode = #tpu.pipeline_mode<synchronous>, transform_indices = @transform_6, window_bounds = array<i64: 1, 32>}, {pipeline_mode = #tpu.pipeline_mode<synchronous>, transform_indices = @transform_7, window_bounds = array<i64: 32, 32>}, {pipeline_mode = #tpu.pipeline_mode<synchronous>, transform_indices = @transform_8, window_bounds = array<i64: 1, 32>}, {pipeline_mode = #tpu.pipeline_mode<synchronous>, transform_indices = @transform_9, window_bounds = array<i64: 32, 128>}, {pipeline_mode = #tpu.pipeline_mode<synchronous>, transform_indices = @transform_10, window_bounds = array<i64: 1, 128>}, {pipeline_mode = #tpu.pipeline_mode<synchronous>, transform_indices = @transform_11, window_bounds = array<i64: 128, 32>}, {pipeline_mode = #tpu.pipeline_mode<synchronous>, transform_indices = @transform_12, window_bounds = array<i64: 1, 32>}, {pipeline_mode = #tpu.pipeline_mode<synchronous>, transform_indices = @transform_13, window_bounds = array<i64: 1, 32>}, {pipeline_mode = #tpu.pipeline_mode<synchronous>, transform_indices = @transform_14, window_bounds = array<i64: 1, 32>}, {transform_indices = @transform_15, window_bounds = array<i64: 1, 8, 32>}]} {
    %c8_i32 = arith.constant 8 : i32
    %0 = arith.muli %arg1, %c8_i32 : i32
    %1 = tpu.assume_multiple %0, 8 : i32
    %c0 = arith.constant 0 : index
    %c0_0 = arith.constant 0 : index
    %2 = vector.load %arg15[%c0, %c0_0] : memref<1x32xf32, #tpu.memory_space<vmem>>, vector<1x32xf32>
    %c0_1 = arith.constant 0 : index
    %c0_2 = arith.constant 0 : index
    %3 = vector.load %arg16[%c0_1, %c0_2] : memref<1x32xf32, #tpu.memory_space<vmem>>, vector<1x32xf32>
    %c0_i32 = arith.constant 0 : i32
    %4 = arith.cmpi eq, %arg1, %c0_i32 : i32
    %5 = arith.extui %4 : i1 to i32
    %c0_i32_3 = arith.constant 0 : i32
    %6 = arith.cmpi ne, %5, %c0_i32_3 : i32
    scf.if %6 {
      %c0_76 = arith.constant 0 : index
      %c0_77 = arith.constant 0 : index
      %122 = vector.load %arg5[%c0_76, %c0_77] : memref<32x32xf32, #tpu.memory_space<vmem>>, vector<32x32xf32>
      %c0_78 = arith.constant 0 : index
      %c0_79 = arith.constant 0 : index
      %123 = vector.load %arg7[%c0_78, %c0_79] : memref<32x32xf32, #tpu.memory_space<vmem>>, vector<32x32xf32>
      %c0_80 = arith.constant 0 : index
      %c0_81 = arith.constant 0 : index
      %124 = vector.load %arg6[%c0_80, %c0_81] : memref<1x32xf32, #tpu.memory_space<vmem>>, vector<1x32xf32>
      %c0_82 = arith.constant 0 : index
      %c0_83 = arith.constant 0 : index
      %125 = vector.load %arg8[%c0_82, %c0_83] : memref<1x32xf32, #tpu.memory_space<vmem>>, vector<1x32xf32>
      %c0_84 = arith.constant 0 : index
      %c0_85 = arith.constant 0 : index
      %c0_86 = arith.constant 0 : index
      %126 = vector.load %arg2[%c0_84, %c0_85, %c0_86] : memref<1x8x32xf32, #tpu.memory_space<vmem>>, vector<1x8x32xf32>
      %127 = vector.shape_cast %126 : vector<1x8x32xf32> to vector<8x32xf32>
      %cst_87 = arith.constant dense<0.000000e+00> : vector<8xf32>
      %128 = vector.multi_reduction <add>, %127, %cst_87 [1] : vector<8x32xf32> to vector<8xf32>
      %129 = vector.shape_cast %128 : vector<8xf32> to vector<8x1xf32>
      %cst_88 = arith.constant 3.200000e+01 : f32
      %130 = vector.broadcast %cst_88 : f32 to vector<8x1xf32>
      %131 = arith.divf %129, %130 : vector<8x1xf32>
      %132 = vector.broadcast %131 : vector<8x1xf32> to vector<8x32xf32>
      %133 = arith.subf %127, %132 : vector<8x32xf32>
      %134 = arith.mulf %133, %133 : vector<8x32xf32>
      %cst_89 = arith.constant dense<0.000000e+00> : vector<8xf32>
      %135 = vector.multi_reduction <add>, %134, %cst_89 [1] : vector<8x32xf32> to vector<8xf32>
      %136 = vector.shape_cast %135 : vector<8xf32> to vector<8x1xf32>
      %cst_90 = arith.constant 3.200000e+01 : f32
      %137 = vector.broadcast %cst_90 : f32 to vector<8x1xf32>
      %138 = arith.divf %136, %137 : vector<8x1xf32>
      %139 = vector.broadcast %131 : vector<8x1xf32> to vector<8x32xf32>
      %140 = arith.subf %127, %139 : vector<8x32xf32>
      %cst_91 = arith.constant 9.99999974E-6 : f32
      %141 = vector.broadcast %cst_91 : f32 to vector<8x1xf32>
      %142 = arith.addf %138, %141 : vector<8x1xf32>
      %143 = math.rsqrt %142 : vector<8x1xf32>
      %144 = vector.broadcast %143 : vector<8x1xf32> to vector<8x32xf32>
      %145 = arith.mulf %140, %144 : vector<8x32xf32>
      %146 = vector.broadcast %2 : vector<1x32xf32> to vector<8x32xf32>
      %147 = arith.mulf %145, %146 : vector<8x32xf32>
      %148 = vector.broadcast %3 : vector<1x32xf32> to vector<8x32xf32>
      %149 = arith.addf %147, %148 : vector<8x32xf32>
      %c0_92 = arith.constant 0 : index
      %c0_93 = arith.constant 0 : index
      %c0_94 = arith.constant 0 : index
      %150 = vector.load %arg18[%c0_92, %c0_93, %c0_94] : memref<1x8x32xf32, #tpu.memory_space<vmem>>, vector<1x8x32xf32>
      %151 = vector.shape_cast %150 : vector<1x8x32xf32> to vector<8x32xf32>
      %152 = vector.shape_cast %149 : vector<8x32xf32> to vector<1x8x32xf32>
      tpu.vector_store %arg18[%c0_92, %c0_93, %c0_94], %152 {strides = array<i32>} : memref<1x8x32xf32, #tpu.memory_space<vmem>>, vector<1x8x32xf32>,
      %cst_95 = arith.constant dense<0.000000e+00> : vector<8x32xf32>
      %153 = tpu.matmul %149, %122, %cst_95 {dimension_numbers = #tpu.dot_dimension_numbers<[1], [0], [0], [1], [0, 0, 1, 1], [], []>} : vector<8x32xf32>, vector<32x32xf32>, vector<8x32xf32> -> vector<8x32xf32>
      %154 = vector.broadcast %124 : vector<1x32xf32> to vector<8x32xf32>
      %155 = arith.addf %153, %154 : vector<8x32xf32>
      %c0_96 = arith.constant 0 : index
      %c0_97 = arith.constant 0 : index
      %c0_98 = arith.constant 0 : index
      %156 = vector.load %arg19[%c0_96, %c0_97, %c0_98] : memref<1x8x32xf32, #tpu.memory_space<vmem>>, vector<1x8x32xf32>
      %157 = vector.shape_cast %156 : vector<1x8x32xf32> to vector<8x32xf32>
      %158 = vector.shape_cast %155 : vector<8x32xf32> to vector<1x8x32xf32>
      tpu.vector_store %arg19[%c0_96, %c0_97, %c0_98], %158 {strides = array<i32>} : memref<1x8x32xf32, #tpu.memory_space<vmem>>, vector<1x8x32xf32>,
      %cst_99 = arith.constant dense<0.000000e+00> : vector<8x32xf32>
      %159 = tpu.matmul %149, %123, %cst_99 {dimension_numbers = #tpu.dot_dimension_numbers<[1], [0], [0], [1], [0, 0, 1, 1], [], []>} : vector<8x32xf32>, vector<32x32xf32>, vector<8x32xf32> -> vector<8x32xf32>
      %160 = vector.broadcast %125 : vector<1x32xf32> to vector<8x32xf32>
      %161 = arith.addf %159, %160 : vector<8x32xf32>
      %c0_100 = arith.constant 0 : index
      %c0_101 = arith.constant 0 : index
      %c0_102 = arith.constant 0 : index
      %162 = vector.load %arg20[%c0_100, %c0_101, %c0_102] : memref<1x8x32xf32, #tpu.memory_space<vmem>>, vector<1x8x32xf32>
      %163 = vector.shape_cast %162 : vector<1x8x32xf32> to vector<8x32xf32>
      %164 = vector.shape_cast %161 : vector<8x32xf32> to vector<1x8x32xf32>
      tpu.vector_store %arg20[%c0_100, %c0_101, %c0_102], %164 {strides = array<i32>} : memref<1x8x32xf32, #tpu.memory_space<vmem>>, vector<1x8x32xf32>,
    } else {
    }
    %c0_4 = arith.constant 0 : index
    %7 = arith.index_cast %1 : i32 to index
    %c0_5 = arith.constant 0 : index
    %8 = vector.load %arg2[%c0_4, %7, %c0_5] : memref<1x8x32xf32, #tpu.memory_space<vmem>>, vector<1x8x32xf32>
    %9 = vector.shape_cast %8 : vector<1x8x32xf32> to vector<8x32xf32>
    %10 = arith.index_cast %arg1 : i32 to index
    %c0_6 = arith.constant 0 : index
    %c0_7 = arith.constant 0 : index
    %11 = vector.load %arg18[%10, %c0_6, %c0_7] : memref<1x8x32xf32, #tpu.memory_space<vmem>>, vector<1x8x32xf32>
    %12 = vector.shape_cast %11 : vector<1x8x32xf32> to vector<8x32xf32>
    %c0_8 = arith.constant 0 : index
    %c0_9 = arith.constant 0 : index
    %13 = vector.load %arg3[%c0_8, %c0_9] : memref<32x32xf32, #tpu.memory_space<vmem>>, vector<32x32xf32>
    %cst = arith.constant dense<0.000000e+00> : vector<8x32xf32>
    %14 = tpu.matmul %12, %13, %cst {dimension_numbers = #tpu.dot_dimension_numbers<[1], [0], [0], [1], [0, 0, 1, 1], [], []>} : vector<8x32xf32>, vector<32x32xf32>, vector<8x32xf32> -> vector<8x32xf32>
    %c0_10 = arith.constant 0 : index
    %c0_11 = arith.constant 0 : index
    %15 = vector.load %arg4[%c0_10, %c0_11] : memref<1x32xf32, #tpu.memory_space<vmem>>, vector<1x32xf32>
    %16 = vector.broadcast %15 : vector<1x32xf32> to vector<8x32xf32>
    %17 = arith.addf %14, %16 : vector<8x32xf32>
    %18 = vector.extract_strided_slice %17 {offsets = [0, 0], sizes = [8, 8], strides = [1, 1]} : vector<8x32xf32> to vector<8x8xf32>
    %19 = vector.extract_strided_slice %17 {offsets = [0, 8], sizes = [8, 8], strides = [1, 1]} : vector<8x32xf32> to vector<8x8xf32>
    %20 = vector.extract_strided_slice %17 {offsets = [0, 16], sizes = [8, 8], strides = [1, 1]} : vector<8x32xf32> to vector<8x8xf32>
    %21 = vector.extract_strided_slice %17 {offsets = [0, 24], sizes = [8, 8], strides = [1, 1]} : vector<8x32xf32> to vector<8x8xf32>
    %cst_12 = arith.constant 0xFF800000 : f32
    %22 = vector.broadcast %cst_12 : f32 to vector<4x8x1xf32>
    %c0_13 = arith.constant 0 : index
    %c0_14 = arith.constant 0 : index
    %c0_15 = arith.constant 0 : index
    %23 = vector.load %arg21[%c0_13, %c0_14, %c0_15] : memref<4x8x1xf32, #tpu.memory_space<vmem>>, vector<4x8x1xf32>
    tpu.vector_store %arg21[%c0_13, %c0_14, %c0_15], %22 {strides = array<i32>} : memref<4x8x1xf32, #tpu.memory_space<vmem>>, vector<4x8x1xf32>,
    %cst_16 = arith.constant 0.000000e+00 : f32
    %24 = vector.broadcast %cst_16 : f32 to vector<4x8x1xf32>
    %c0_17 = arith.constant 0 : index
    %c0_18 = arith.constant 0 : index
    %c0_19 = arith.constant 0 : index
    %25 = vector.load %arg22[%c0_17, %c0_18, %c0_19] : memref<4x8x1xf32, #tpu.memory_space<vmem>>, vector<4x8x1xf32>
    tpu.vector_store %arg22[%c0_17, %c0_18, %c0_19], %24 {strides = array<i32>} : memref<4x8x1xf32, #tpu.memory_space<vmem>>, vector<4x8x1xf32>,
    %cst_20 = arith.constant 0.000000e+00 : f32
    %26 = vector.broadcast %cst_20 : f32 to vector<4x8x8xf32>
    %c0_21 = arith.constant 0 : index
    %c0_22 = arith.constant 0 : index
    %c0_23 = arith.constant 0 : index
    %27 = vector.load %arg23[%c0_21, %c0_22, %c0_23] : memref<4x8x8xf32, #tpu.memory_space<vmem>>, vector<4x8x8xf32>
    tpu.vector_store %arg23[%c0_21, %c0_22, %c0_23], %26 {strides = array<i32>} : memref<4x8x8xf32, #tpu.memory_space<vmem>>, vector<4x8x8xf32>,
    %28 = tpu.iota {dimensions = array<i32: 0>} : vector<8x8xi32>
    %29 = vector.broadcast %1 : i32 to vector<8x8xi32>
    %30 = arith.addi %29, %28 : vector<8x8xi32>
    %31 = tpu.iota {dimensions = array<i32: 1>} : vector<8x8xi32>
    %c1_i32 = arith.constant 1 : i32
    %32 = arith.addi %arg1, %c1_i32 : i32
    %c0_i32_24 = arith.constant 0 : i32
    %c0_i32_25 = arith.constant 0 : i32
    %33 = arith.subi %32, %c0_i32_25 : i32
    %34 = arith.addi %c0_i32_25, %33 : i32
    %c1_i32_26 = arith.constant 1 : i32
    scf.for %arg24 = %c0_i32_25 to %34 step %c1_i32_26  : i32 {
      %122 = arith.index_cast %arg24 : i32 to index
      %c0_76 = arith.constant 0 : index
      %c0_77 = arith.constant 0 : index
      %123 = vector.load %arg19[%122, %c0_76, %c0_77] : memref<1x8x32xf32, #tpu.memory_space<vmem>>, vector<1x8x32xf32>
      %124 = vector.shape_cast %123 : vector<1x8x32xf32> to vector<8x32xf32>
      %125 = arith.index_cast %arg24 : i32 to index
      %c0_78 = arith.constant 0 : index
      %c0_79 = arith.constant 0 : index
      %126 = vector.load %arg20[%125, %c0_78, %c0_79] : memref<1x8x32xf32, #tpu.memory_space<vmem>>, vector<1x8x32xf32>
      %127 = vector.shape_cast %126 : vector<1x8x32xf32> to vector<8x32xf32>
      %c8_i32_80 = arith.constant 8 : i32
      %128 = arith.muli %arg24, %c8_i32_80 : i32
      %129 = vector.broadcast %128 : i32 to vector<8x8xi32>
      %130 = arith.addi %129, %31 : vector<8x8xi32>
      %131 = arith.cmpi sle, %130, %30 : vector<8x8xi32>
      %132 = vector.extract_strided_slice %124 {offsets = [0, 0], sizes = [8, 8], strides = [1, 1]} : vector<8x32xf32> to vector<8x8xf32>
      %cst_81 = arith.constant dense<0.000000e+00> : vector<8x8xf32>
      %133 = tpu.matmul %18, %132, %cst_81 {dimension_numbers = #tpu.dot_dimension_numbers<[1], [1], [0], [0], [0, 0, 1, 0], [], []>} : vector<8x8xf32>, vector<8x8xf32>, vector<8x8xf32> -> vector<8x8xf32>
      %cst_82 = arith.constant -1.000000e+30 : f32
      %134 = vector.broadcast %cst_82 : f32 to vector<8x8xf32>
      %135 = arith.select %131, %133, %134 : vector<8x8xi1>, vector<8x8xf32>
      %c0_83 = arith.constant 0 : index
      %c0_84 = arith.constant 0 : index
      %c0_85 = arith.constant 0 : index
      %136 = vector.load %arg21[%c0_83, %c0_84, %c0_85] : memref<4x8x1xf32, #tpu.memory_space<vmem>>, vector<1x8x1xf32>
      %137 = vector.shape_cast %136 : vector<1x8x1xf32> to vector<8x1xf32>
      %cst_86 = arith.constant dense<0xFF800000> : vector<8xf32>
      %138 = vector.multi_reduction <maximumf>, %135, %cst_86 [1] : vector<8x8xf32> to vector<8xf32>
      %139 = vector.shape_cast %138 : vector<8xf32> to vector<8x1xf32>
      %140 = arith.maximumf %137, %139 : vector<8x1xf32>
      %141 = arith.subf %137, %140 : vector<8x1xf32>
      %142 = math.exp %141 : vector<8x1xf32>
      %143 = vector.broadcast %140 : vector<8x1xf32> to vector<8x8xf32>
      %144 = arith.subf %135, %143 : vector<8x8xf32>
      %145 = math.exp %144 : vector<8x8xf32>
      %c0_87 = arith.constant 0 : index
      %c0_88 = arith.constant 0 : index
      %c0_89 = arith.constant 0 : index
      %146 = vector.load %arg22[%c0_87, %c0_88, %c0_89] : memref<4x8x1xf32, #tpu.memory_space<vmem>>, vector<1x8x1xf32>
      %147 = vector.shape_cast %146 : vector<1x8x1xf32> to vector<8x1xf32>
      %148 = arith.mulf %142, %147 : vector<8x1xf32>
      %cst_90 = arith.constant dense<0.000000e+00> : vector<8xf32>
      %149 = vector.multi_reduction <add>, %145, %cst_90 [1] : vector<8x8xf32> to vector<8xf32>
      %150 = vector.shape_cast %149 : vector<8xf32> to vector<8x1xf32>
      %151 = arith.addf %148, %150 : vector<8x1xf32>
      %c0_91 = arith.constant 0 : index
      %c0_92 = arith.constant 0 : index
      %c0_93 = arith.constant 0 : index
      %152 = vector.load %arg22[%c0_91, %c0_92, %c0_93] : memref<4x8x1xf32, #tpu.memory_space<vmem>>, vector<1x8x1xf32>
      %153 = vector.shape_cast %152 : vector<1x8x1xf32> to vector<8x1xf32>
      %154 = vector.shape_cast %151 : vector<8x1xf32> to vector<1x8x1xf32>
      tpu.vector_store %arg22[%c0_91, %c0_92, %c0_93], %154 {strides = array<i32>} : memref<4x8x1xf32, #tpu.memory_space<vmem>>, vector<1x8x1xf32>,
      %c0_94 = arith.constant 0 : index
      %c0_95 = arith.constant 0 : index
      %c0_96 = arith.constant 0 : index
      %155 = vector.load %arg23[%c0_94, %c0_95, %c0_96] : memref<4x8x8xf32, #tpu.memory_space<vmem>>, vector<1x8x8xf32>
      %156 = vector.shape_cast %155 : vector<1x8x8xf32> to vector<8x8xf32>
      %157 = vector.broadcast %142 : vector<8x1xf32> to vector<8x8xf32>
      %158 = arith.mulf %157, %156 : vector<8x8xf32>
      %159 = vector.extract_strided_slice %127 {offsets = [0, 0], sizes = [8, 8], strides = [1, 1]} : vector<8x32xf32> to vector<8x8xf32>
      %cst_97 = arith.constant dense<0.000000e+00> : vector<8x8xf32>
      %160 = tpu.matmul %145, %159, %cst_97 {dimension_numbers = #tpu.dot_dimension_numbers<[1], [0], [0], [1], [0, 0, 1, 1], [], []>} : vector<8x8xf32>, vector<8x8xf32>, vector<8x8xf32> -> vector<8x8xf32>
      %161 = arith.addf %158, %160 : vector<8x8xf32>
      %c0_98 = arith.constant 0 : index
      %c0_99 = arith.constant 0 : index
      %c0_100 = arith.constant 0 : index
      %162 = vector.load %arg23[%c0_98, %c0_99, %c0_100] : memref<4x8x8xf32, #tpu.memory_space<vmem>>, vector<1x8x8xf32>
      %163 = vector.shape_cast %162 : vector<1x8x8xf32> to vector<8x8xf32>
      %164 = vector.shape_cast %161 : vector<8x8xf32> to vector<1x8x8xf32>
      tpu.vector_store %arg23[%c0_98, %c0_99, %c0_100], %164 {strides = array<i32>} : memref<4x8x8xf32, #tpu.memory_space<vmem>>, vector<1x8x8xf32>,
      %c0_101 = arith.constant 0 : index
      %c0_102 = arith.constant 0 : index
      %c0_103 = arith.constant 0 : index
      %165 = vector.load %arg21[%c0_101, %c0_102, %c0_103] : memref<4x8x1xf32, #tpu.memory_space<vmem>>, vector<1x8x1xf32>
      %166 = vector.shape_cast %165 : vector<1x8x1xf32> to vector<8x1xf32>
      %167 = vector.shape_cast %140 : vector<8x1xf32> to vector<1x8x1xf32>
      tpu.vector_store %arg21[%c0_101, %c0_102, %c0_103], %167 {strides = array<i32>} : memref<4x8x1xf32, #tpu.memory_space<vmem>>, vector<1x8x1xf32>,
      %168 = vector.extract_strided_slice %124 {offsets = [0, 8], sizes = [8, 8], strides = [1, 1]} : vector<8x32xf32> to vector<8x8xf32>
      %cst_104 = arith.constant dense<0.000000e+00> : vector<8x8xf32>
      %169 = tpu.matmul %19, %168, %cst_104 {dimension_numbers = #tpu.dot_dimension_numbers<[1], [1], [0], [0], [0, 0, 1, 0], [], []>} : vector<8x8xf32>, vector<8x8xf32>, vector<8x8xf32> -> vector<8x8xf32>
      %cst_105 = arith.constant -1.000000e+30 : f32
      %170 = vector.broadcast %cst_105 : f32 to vector<8x8xf32>
      %171 = arith.select %131, %169, %170 : vector<8x8xi1>, vector<8x8xf32>
      %c1_106 = arith.constant 1 : index
      %c0_107 = arith.constant 0 : index
      %c0_108 = arith.constant 0 : index
      %172 = vector.load %arg21[%c1_106, %c0_107, %c0_108] : memref<4x8x1xf32, #tpu.memory_space<vmem>>, vector<1x8x1xf32>
      %173 = vector.shape_cast %172 : vector<1x8x1xf32> to vector<8x1xf32>
      %cst_109 = arith.constant dense<0xFF800000> : vector<8xf32>
      %174 = vector.multi_reduction <maximumf>, %171, %cst_109 [1] : vector<8x8xf32> to vector<8xf32>
      %175 = vector.shape_cast %174 : vector<8xf32> to vector<8x1xf32>
      %176 = arith.maximumf %173, %175 : vector<8x1xf32>
      %177 = arith.subf %173, %176 : vector<8x1xf32>
      %178 = math.exp %177 : vector<8x1xf32>
      %179 = vector.broadcast %176 : vector<8x1xf32> to vector<8x8xf32>
      %180 = arith.subf %171, %179 : vector<8x8xf32>
      %181 = math.exp %180 : vector<8x8xf32>
      %c1_110 = arith.constant 1 : index
      %c0_111 = arith.constant 0 : index
      %c0_112 = arith.constant 0 : index
      %182 = vector.load %arg22[%c1_110, %c0_111, %c0_112] : memref<4x8x1xf32, #tpu.memory_space<vmem>>, vector<1x8x1xf32>
      %183 = vector.shape_cast %182 : vector<1x8x1xf32> to vector<8x1xf32>
      %184 = arith.mulf %178, %183 : vector<8x1xf32>
      %cst_113 = arith.constant dense<0.000000e+00> : vector<8xf32>
      %185 = vector.multi_reduction <add>, %181, %cst_113 [1] : vector<8x8xf32> to vector<8xf32>
      %186 = vector.shape_cast %185 : vector<8xf32> to vector<8x1xf32>
      %187 = arith.addf %184, %186 : vector<8x1xf32>
      %c1_114 = arith.constant 1 : index
      %c0_115 = arith.constant 0 : index
      %c0_116 = arith.constant 0 : index
      %188 = vector.load %arg22[%c1_114, %c0_115, %c0_116] : memref<4x8x1xf32, #tpu.memory_space<vmem>>, vector<1x8x1xf32>
      %189 = vector.shape_cast %188 : vector<1x8x1xf32> to vector<8x1xf32>
      %190 = vector.shape_cast %187 : vector<8x1xf32> to vector<1x8x1xf32>
      tpu.vector_store %arg22[%c1_114, %c0_115, %c0_116], %190 {strides = array<i32>} : memref<4x8x1xf32, #tpu.memory_space<vmem>>, vector<1x8x1xf32>,
      %c1_117 = arith.constant 1 : index
      %c0_118 = arith.constant 0 : index
      %c0_119 = arith.constant 0 : index
      %191 = vector.load %arg23[%c1_117, %c0_118, %c0_119] : memref<4x8x8xf32, #tpu.memory_space<vmem>>, vector<1x8x8xf32>
      %192 = vector.shape_cast %191 : vector<1x8x8xf32> to vector<8x8xf32>
      %193 = vector.broadcast %178 : vector<8x1xf32> to vector<8x8xf32>
      %194 = arith.mulf %193, %192 : vector<8x8xf32>
      %195 = vector.extract_strided_slice %127 {offsets = [0, 8], sizes = [8, 8], strides = [1, 1]} : vector<8x32xf32> to vector<8x8xf32>
      %cst_120 = arith.constant dense<0.000000e+00> : vector<8x8xf32>
      %196 = tpu.matmul %181, %195, %cst_120 {dimension_numbers = #tpu.dot_dimension_numbers<[1], [0], [0], [1], [0, 0, 1, 1], [], []>} : vector<8x8xf32>, vector<8x8xf32>, vector<8x8xf32> -> vector<8x8xf32>
      %197 = arith.addf %194, %196 : vector<8x8xf32>
      %c1_121 = arith.constant 1 : index
      %c0_122 = arith.constant 0 : index
      %c0_123 = arith.constant 0 : index
      %198 = vector.load %arg23[%c1_121, %c0_122, %c0_123] : memref<4x8x8xf32, #tpu.memory_space<vmem>>, vector<1x8x8xf32>
      %199 = vector.shape_cast %198 : vector<1x8x8xf32> to vector<8x8xf32>
      %200 = vector.shape_cast %197 : vector<8x8xf32> to vector<1x8x8xf32>
      tpu.vector_store %arg23[%c1_121, %c0_122, %c0_123], %200 {strides = array<i32>} : memref<4x8x8xf32, #tpu.memory_space<vmem>>, vector<1x8x8xf32>,
      %c1_124 = arith.constant 1 : index
      %c0_125 = arith.constant 0 : index
      %c0_126 = arith.constant 0 : index
      %201 = vector.load %arg21[%c1_124, %c0_125, %c0_126] : memref<4x8x1xf32, #tpu.memory_space<vmem>>, vector<1x8x1xf32>
      %202 = vector.shape_cast %201 : vector<1x8x1xf32> to vector<8x1xf32>
      %203 = vector.shape_cast %176 : vector<8x1xf32> to vector<1x8x1xf32>
      tpu.vector_store %arg21[%c1_124, %c0_125, %c0_126], %203 {strides = array<i32>} : memref<4x8x1xf32, #tpu.memory_space<vmem>>, vector<1x8x1xf32>,
      %204 = vector.extract_strided_slice %124 {offsets = [0, 16], sizes = [8, 8], strides = [1, 1]} : vector<8x32xf32> to vector<8x8xf32>
      %cst_127 = arith.constant dense<0.000000e+00> : vector<8x8xf32>
      %205 = tpu.matmul %20, %204, %cst_127 {dimension_numbers = #tpu.dot_dimension_numbers<[1], [1], [0], [0], [0, 0, 1, 0], [], []>} : vector<8x8xf32>, vector<8x8xf32>, vector<8x8xf32> -> vector<8x8xf32>
      %cst_128 = arith.constant -1.000000e+30 : f32
      %206 = vector.broadcast %cst_128 : f32 to vector<8x8xf32>
      %207 = arith.select %131, %205, %206 : vector<8x8xi1>, vector<8x8xf32>
      %c2_129 = arith.constant 2 : index
      %c0_130 = arith.constant 0 : index
      %c0_131 = arith.constant 0 : index
      %208 = vector.load %arg21[%c2_129, %c0_130, %c0_131] : memref<4x8x1xf32, #tpu.memory_space<vmem>>, vector<1x8x1xf32>
      %209 = vector.shape_cast %208 : vector<1x8x1xf32> to vector<8x1xf32>
      %cst_132 = arith.constant dense<0xFF800000> : vector<8xf32>
      %210 = vector.multi_reduction <maximumf>, %207, %cst_132 [1] : vector<8x8xf32> to vector<8xf32>
      %211 = vector.shape_cast %210 : vector<8xf32> to vector<8x1xf32>
      %212 = arith.maximumf %209, %211 : vector<8x1xf32>
      %213 = arith.subf %209, %212 : vector<8x1xf32>
      %214 = math.exp %213 : vector<8x1xf32>
      %215 = vector.broadcast %212 : vector<8x1xf32> to vector<8x8xf32>
      %216 = arith.subf %207, %215 : vector<8x8xf32>
      %217 = math.exp %216 : vector<8x8xf32>
      %c2_133 = arith.constant 2 : index
      %c0_134 = arith.constant 0 : index
      %c0_135 = arith.constant 0 : index
      %218 = vector.load %arg22[%c2_133, %c0_134, %c0_135] : memref<4x8x1xf32, #tpu.memory_space<vmem>>, vector<1x8x1xf32>
      %219 = vector.shape_cast %218 : vector<1x8x1xf32> to vector<8x1xf32>
      %220 = arith.mulf %214, %219 : vector<8x1xf32>
      %cst_136 = arith.constant dense<0.000000e+00> : vector<8xf32>
      %221 = vector.multi_reduction <add>, %217, %cst_136 [1] : vector<8x8xf32> to vector<8xf32>
      %222 = vector.shape_cast %221 : vector<8xf32> to vector<8x1xf32>
      %223 = arith.addf %220, %222 : vector<8x1xf32>
      %c2_137 = arith.constant 2 : index
      %c0_138 = arith.constant 0 : index
      %c0_139 = arith.constant 0 : index
      %224 = vector.load %arg22[%c2_137, %c0_138, %c0_139] : memref<4x8x1xf32, #tpu.memory_space<vmem>>, vector<1x8x1xf32>
      %225 = vector.shape_cast %224 : vector<1x8x1xf32> to vector<8x1xf32>
      %226 = vector.shape_cast %223 : vector<8x1xf32> to vector<1x8x1xf32>
      tpu.vector_store %arg22[%c2_137, %c0_138, %c0_139], %226 {strides = array<i32>} : memref<4x8x1xf32, #tpu.memory_space<vmem>>, vector<1x8x1xf32>,
      %c2_140 = arith.constant 2 : index
      %c0_141 = arith.constant 0 : index
      %c0_142 = arith.constant 0 : index
      %227 = vector.load %arg23[%c2_140, %c0_141, %c0_142] : memref<4x8x8xf32, #tpu.memory_space<vmem>>, vector<1x8x8xf32>
      %228 = vector.shape_cast %227 : vector<1x8x8xf32> to vector<8x8xf32>
      %229 = vector.broadcast %214 : vector<8x1xf32> to vector<8x8xf32>
      %230 = arith.mulf %229, %228 : vector<8x8xf32>
      %231 = vector.extract_strided_slice %127 {offsets = [0, 16], sizes = [8, 8], strides = [1, 1]} : vector<8x32xf32> to vector<8x8xf32>
      %cst_143 = arith.constant dense<0.000000e+00> : vector<8x8xf32>
      %232 = tpu.matmul %217, %231, %cst_143 {dimension_numbers = #tpu.dot_dimension_numbers<[1], [0], [0], [1], [0, 0, 1, 1], [], []>} : vector<8x8xf32>, vector<8x8xf32>, vector<8x8xf32> -> vector<8x8xf32>
      %233 = arith.addf %230, %232 : vector<8x8xf32>
      %c2_144 = arith.constant 2 : index
      %c0_145 = arith.constant 0 : index
      %c0_146 = arith.constant 0 : index
      %234 = vector.load %arg23[%c2_144, %c0_145, %c0_146] : memref<4x8x8xf32, #tpu.memory_space<vmem>>, vector<1x8x8xf32>
      %235 = vector.shape_cast %234 : vector<1x8x8xf32> to vector<8x8xf32>
      %236 = vector.shape_cast %233 : vector<8x8xf32> to vector<1x8x8xf32>
      tpu.vector_store %arg23[%c2_144, %c0_145, %c0_146], %236 {strides = array<i32>} : memref<4x8x8xf32, #tpu.memory_space<vmem>>, vector<1x8x8xf32>,
      %c2_147 = arith.constant 2 : index
      %c0_148 = arith.constant 0 : index
      %c0_149 = arith.constant 0 : index
      %237 = vector.load %arg21[%c2_147, %c0_148, %c0_149] : memref<4x8x1xf32, #tpu.memory_space<vmem>>, vector<1x8x1xf32>
      %238 = vector.shape_cast %237 : vector<1x8x1xf32> to vector<8x1xf32>
      %239 = vector.shape_cast %212 : vector<8x1xf32> to vector<1x8x1xf32>
      tpu.vector_store %arg21[%c2_147, %c0_148, %c0_149], %239 {strides = array<i32>} : memref<4x8x1xf32, #tpu.memory_space<vmem>>, vector<1x8x1xf32>,
      %240 = vector.extract_strided_slice %124 {offsets = [0, 24], sizes = [8, 8], strides = [1, 1]} : vector<8x32xf32> to vector<8x8xf32>
      %cst_150 = arith.constant dense<0.000000e+00> : vector<8x8xf32>
      %241 = tpu.matmul %21, %240, %cst_150 {dimension_numbers = #tpu.dot_dimension_numbers<[1], [1], [0], [0], [0, 0, 1, 0], [], []>} : vector<8x8xf32>, vector<8x8xf32>, vector<8x8xf32> -> vector<8x8xf32>
      %cst_151 = arith.constant -1.000000e+30 : f32
      %242 = vector.broadcast %cst_151 : f32 to vector<8x8xf32>
      %243 = arith.select %131, %241, %242 : vector<8x8xi1>, vector<8x8xf32>
      %c3_152 = arith.constant 3 : index
      %c0_153 = arith.constant 0 : index
      %c0_154 = arith.constant 0 : index
      %244 = vector.load %arg21[%c3_152, %c0_153, %c0_154] : memref<4x8x1xf32, #tpu.memory_space<vmem>>, vector<1x8x1xf32>
      %245 = vector.shape_cast %244 : vector<1x8x1xf32> to vector<8x1xf32>
      %cst_155 = arith.constant dense<0xFF800000> : vector<8xf32>
      %246 = vector.multi_reduction <maximumf>, %243, %cst_155 [1] : vector<8x8xf32> to vector<8xf32>
      %247 = vector.shape_cast %246 : vector<8xf32> to vector<8x1xf32>
      %248 = arith.maximumf %245, %247 : vector<8x1xf32>
      %249 = arith.subf %245, %248 : vector<8x1xf32>
      %250 = math.exp %249 : vector<8x1xf32>
      %251 = vector.broadcast %248 : vector<8x1xf32> to vector<8x8xf32>
      %252 = arith.subf %243, %251 : vector<8x8xf32>
      %253 = math.exp %252 : vector<8x8xf32>
      %c3_156 = arith.constant 3 : index
      %c0_157 = arith.constant 0 : index
      %c0_158 = arith.constant 0 : index
      %254 = vector.load %arg22[%c3_156, %c0_157, %c0_158] : memref<4x8x1xf32, #tpu.memory_space<vmem>>, vector<1x8x1xf32>
      %255 = vector.shape_cast %254 : vector<1x8x1xf32> to vector<8x1xf32>
      %256 = arith.mulf %250, %255 : vector<8x1xf32>
      %cst_159 = arith.constant dense<0.000000e+00> : vector<8xf32>
      %257 = vector.multi_reduction <add>, %253, %cst_159 [1] : vector<8x8xf32> to vector<8xf32>
      %258 = vector.shape_cast %257 : vector<8xf32> to vector<8x1xf32>
      %259 = arith.addf %256, %258 : vector<8x1xf32>
      %c3_160 = arith.constant 3 : index
      %c0_161 = arith.constant 0 : index
      %c0_162 = arith.constant 0 : index
      %260 = vector.load %arg22[%c3_160, %c0_161, %c0_162] : memref<4x8x1xf32, #tpu.memory_space<vmem>>, vector<1x8x1xf32>
      %261 = vector.shape_cast %260 : vector<1x8x1xf32> to vector<8x1xf32>
      %262 = vector.shape_cast %259 : vector<8x1xf32> to vector<1x8x1xf32>
      tpu.vector_store %arg22[%c3_160, %c0_161, %c0_162], %262 {strides = array<i32>} : memref<4x8x1xf32, #tpu.memory_space<vmem>>, vector<1x8x1xf32>,
      %c3_163 = arith.constant 3 : index
      %c0_164 = arith.constant 0 : index
      %c0_165 = arith.constant 0 : index
      %263 = vector.load %arg23[%c3_163, %c0_164, %c0_165] : memref<4x8x8xf32, #tpu.memory_space<vmem>>, vector<1x8x8xf32>
      %264 = vector.shape_cast %263 : vector<1x8x8xf32> to vector<8x8xf32>
      %265 = vector.broadcast %250 : vector<8x1xf32> to vector<8x8xf32>
      %266 = arith.mulf %265, %264 : vector<8x8xf32>
      %267 = vector.extract_strided_slice %127 {offsets = [0, 24], sizes = [8, 8], strides = [1, 1]} : vector<8x32xf32> to vector<8x8xf32>
      %cst_166 = arith.constant dense<0.000000e+00> : vector<8x8xf32>
      %268 = tpu.matmul %253, %267, %cst_166 {dimension_numbers = #tpu.dot_dimension_numbers<[1], [0], [0], [1], [0, 0, 1, 1], [], []>} : vector<8x8xf32>, vector<8x8xf32>, vector<8x8xf32> -> vector<8x8xf32>
      %269 = arith.addf %266, %268 : vector<8x8xf32>
      %c3_167 = arith.constant 3 : index
      %c0_168 = arith.constant 0 : index
      %c0_169 = arith.constant 0 : index
      %270 = vector.load %arg23[%c3_167, %c0_168, %c0_169] : memref<4x8x8xf32, #tpu.memory_space<vmem>>, vector<1x8x8xf32>
      %271 = vector.shape_cast %270 : vector<1x8x8xf32> to vector<8x8xf32>
      %272 = vector.shape_cast %269 : vector<8x8xf32> to vector<1x8x8xf32>
      tpu.vector_store %arg23[%c3_167, %c0_168, %c0_169], %272 {strides = array<i32>} : memref<4x8x8xf32, #tpu.memory_space<vmem>>, vector<1x8x8xf32>,
      %c3_170 = arith.constant 3 : index
      %c0_171 = arith.constant 0 : index
      %c0_172 = arith.constant 0 : index
      %273 = vector.load %arg21[%c3_170, %c0_171, %c0_172] : memref<4x8x1xf32, #tpu.memory_space<vmem>>, vector<1x8x1xf32>
      %274 = vector.shape_cast %273 : vector<1x8x1xf32> to vector<8x1xf32>
      %275 = vector.shape_cast %248 : vector<8x1xf32> to vector<1x8x1xf32>
      tpu.vector_store %arg21[%c3_170, %c0_171, %c0_172], %275 {strides = array<i32>} : memref<4x8x1xf32, #tpu.memory_space<vmem>>, vector<1x8x1xf32>,
    }
    %c0_27 = arith.constant 0 : index
    %c0_28 = arith.constant 0 : index
    %c0_29 = arith.constant 0 : index
    %35 = vector.load %arg23[%c0_27, %c0_28, %c0_29] : memref<4x8x8xf32, #tpu.memory_space<vmem>>, vector<1x8x8xf32>
    %36 = vector.shape_cast %35 : vector<1x8x8xf32> to vector<8x8xf32>
    %c0_30 = arith.constant 0 : index
    %c0_31 = arith.constant 0 : index
    %c0_32 = arith.constant 0 : index
    %37 = vector.load %arg22[%c0_30, %c0_31, %c0_32] : memref<4x8x1xf32, #tpu.memory_space<vmem>>, vector<1x8x1xf32>
    %38 = vector.shape_cast %37 : vector<1x8x1xf32> to vector<8x1xf32>
    %39 = tpu.reciprocal %38 {approx = true} : vector<8x1xf32> -> vector<8x1xf32>
    %40 = vector.broadcast %39 : vector<8x1xf32> to vector<8x8xf32>
    %41 = arith.mulf %36, %40 : vector<8x8xf32>
    %c1 = arith.constant 1 : index
    %c0_33 = arith.constant 0 : index
    %c0_34 = arith.constant 0 : index
    %42 = vector.load %arg23[%c1, %c0_33, %c0_34] : memref<4x8x8xf32, #tpu.memory_space<vmem>>, vector<1x8x8xf32>
    %43 = vector.shape_cast %42 : vector<1x8x8xf32> to vector<8x8xf32>
    %c1_35 = arith.constant 1 : index
    %c0_36 = arith.constant 0 : index
    %c0_37 = arith.constant 0 : index
    %44 = vector.load %arg22[%c1_35, %c0_36, %c0_37] : memref<4x8x1xf32, #tpu.memory_space<vmem>>, vector<1x8x1xf32>
    %45 = vector.shape_cast %44 : vector<1x8x1xf32> to vector<8x1xf32>
    %46 = tpu.reciprocal %45 {approx = true} : vector<8x1xf32> -> vector<8x1xf32>
    %47 = vector.broadcast %46 : vector<8x1xf32> to vector<8x8xf32>
    %48 = arith.mulf %43, %47 : vector<8x8xf32>
    %c2 = arith.constant 2 : index
    %c0_38 = arith.constant 0 : index
    %c0_39 = arith.constant 0 : index
    %49 = vector.load %arg23[%c2, %c0_38, %c0_39] : memref<4x8x8xf32, #tpu.memory_space<vmem>>, vector<1x8x8xf32>
    %50 = vector.shape_cast %49 : vector<1x8x8xf32> to vector<8x8xf32>
    %c2_40 = arith.constant 2 : index
    %c0_41 = arith.constant 0 : index
    %c0_42 = arith.constant 0 : index
    %51 = vector.load %arg22[%c2_40, %c0_41, %c0_42] : memref<4x8x1xf32, #tpu.memory_space<vmem>>, vector<1x8x1xf32>
    %52 = vector.shape_cast %51 : vector<1x8x1xf32> to vector<8x1xf32>
    %53 = tpu.reciprocal %52 {approx = true} : vector<8x1xf32> -> vector<8x1xf32>
    %54 = vector.broadcast %53 : vector<8x1xf32> to vector<8x8xf32>
    %55 = arith.mulf %50, %54 : vector<8x8xf32>
    %c3 = arith.constant 3 : index
    %c0_43 = arith.constant 0 : index
    %c0_44 = arith.constant 0 : index
    %56 = vector.load %arg23[%c3, %c0_43, %c0_44] : memref<4x8x8xf32, #tpu.memory_space<vmem>>, vector<1x8x8xf32>
    %57 = vector.shape_cast %56 : vector<1x8x8xf32> to vector<8x8xf32>
    %c3_45 = arith.constant 3 : index
    %c0_46 = arith.constant 0 : index
    %c0_47 = arith.constant 0 : index
    %58 = vector.load %arg22[%c3_45, %c0_46, %c0_47] : memref<4x8x1xf32, #tpu.memory_space<vmem>>, vector<1x8x1xf32>
    %59 = vector.shape_cast %58 : vector<1x8x1xf32> to vector<8x1xf32>
    %60 = tpu.reciprocal %59 {approx = true} : vector<8x1xf32> -> vector<8x1xf32>
    %61 = vector.broadcast %60 : vector<8x1xf32> to vector<8x8xf32>
    %62 = arith.mulf %57, %61 : vector<8x8xf32>
    %63 = tpu.concatenate %41, %48, %55, %62 in 1 : vector<8x8xf32>, vector<8x8xf32>, vector<8x8xf32>, vector<8x8xf32> -> vector<8x32xf32>
    %c0_48 = arith.constant 0 : index
    %c0_49 = arith.constant 0 : index
    %64 = vector.load %arg9[%c0_48, %c0_49] : memref<32x32xf32, #tpu.memory_space<vmem>>, vector<32x32xf32>
    %cst_50 = arith.constant dense<0.000000e+00> : vector<8x32xf32>
    %65 = tpu.matmul %63, %64, %cst_50 {dimension_numbers = #tpu.dot_dimension_numbers<[1], [0], [0], [1], [0, 0, 1, 1], [], []>} : vector<8x32xf32>, vector<32x32xf32>, vector<8x32xf32> -> vector<8x32xf32>
    %c0_51 = arith.constant 0 : index
    %c0_52 = arith.constant 0 : index
    %66 = vector.load %arg10[%c0_51, %c0_52] : memref<1x32xf32, #tpu.memory_space<vmem>>, vector<1x32xf32>
    %67 = vector.broadcast %66 : vector<1x32xf32> to vector<8x32xf32>
    %68 = arith.addf %65, %67 : vector<8x32xf32>
    %69 = arith.addf %9, %68 : vector<8x32xf32>
    %cst_53 = arith.constant dense<0.000000e+00> : vector<8xf32>
    %70 = vector.multi_reduction <add>, %69, %cst_53 [1] : vector<8x32xf32> to vector<8xf32>
    %71 = vector.shape_cast %70 : vector<8xf32> to vector<8x1xf32>
    %cst_54 = arith.constant 3.200000e+01 : f32
    %72 = vector.broadcast %cst_54 : f32 to vector<8x1xf32>
    %73 = arith.divf %71, %72 : vector<8x1xf32>
    %74 = vector.broadcast %73 : vector<8x1xf32> to vector<8x32xf32>
    %75 = arith.subf %69, %74 : vector<8x32xf32>
    %76 = arith.mulf %75, %75 : vector<8x32xf32>
    %cst_55 = arith.constant dense<0.000000e+00> : vector<8xf32>
    %77 = vector.multi_reduction <add>, %76, %cst_55 [1] : vector<8x32xf32> to vector<8xf32>
    %78 = vector.shape_cast %77 : vector<8xf32> to vector<8x1xf32>
    %cst_56 = arith.constant 3.200000e+01 : f32
    %79 = vector.broadcast %cst_56 : f32 to vector<8x1xf32>
    %80 = arith.divf %78, %79 : vector<8x1xf32>
    %81 = vector.broadcast %73 : vector<8x1xf32> to vector<8x32xf32>
    %82 = arith.subf %69, %81 : vector<8x32xf32>
    %cst_57 = arith.constant 9.99999974E-6 : f32
    %83 = vector.broadcast %cst_57 : f32 to vector<8x1xf32>
    %84 = arith.addf %80, %83 : vector<8x1xf32>
    %85 = math.rsqrt %84 : vector<8x1xf32>
    %86 = vector.broadcast %85 : vector<8x1xf32> to vector<8x32xf32>
    %87 = arith.mulf %82, %86 : vector<8x32xf32>
    %88 = vector.broadcast %2 : vector<1x32xf32> to vector<8x32xf32>
    %89 = arith.mulf %87, %88 : vector<8x32xf32>
    %90 = vector.broadcast %3 : vector<1x32xf32> to vector<8x32xf32>
    %91 = arith.addf %89, %90 : vector<8x32xf32>
    %cst_58 = arith.constant 0.000000e+00 : f32
    %92 = vector.broadcast %cst_58 : f32 to vector<8x32xf32>
    %c0_59 = arith.constant 0 : index
    %c0_60 = arith.constant 0 : index
    %93 = vector.load %arg11[%c0_59, %c0_60] : memref<32x128xf32, #tpu.memory_space<vmem>>, vector<32x128xf32>
    %cst_61 = arith.constant dense<0.000000e+00> : vector<8x128xf32>
    %94 = tpu.matmul %91, %93, %cst_61 {dimension_numbers = #tpu.dot_dimension_numbers<[1], [0], [0], [1], [0, 0, 1, 1], [], []>} : vector<8x32xf32>, vector<32x128xf32>, vector<8x128xf32> -> vector<8x128xf32>
    %c0_62 = arith.constant 0 : index
    %c0_63 = arith.constant 0 : index
    %95 = vector.load %arg12[%c0_62, %c0_63] : memref<1x128xf32, #tpu.memory_space<vmem>>, vector<1x128xf32>
    %96 = vector.broadcast %95 : vector<1x128xf32> to vector<8x128xf32>
    %97 = arith.addf %94, %96 : vector<8x128xf32>
    %cst_64 = arith.constant 5.000000e-01 : f32
    %98 = vector.broadcast %cst_64 : f32 to vector<8x128xf32>
    %99 = arith.mulf %98, %97 : vector<8x128xf32>
    %cst_65 = arith.constant 0.636619746 : f32
    %100 = math.sqrt %cst_65 : f32
    %cst_66 = arith.constant 4.471500e-02 : f32
    %101 = vector.broadcast %cst_66 : f32 to vector<8x128xf32>
    %102 = arith.mulf %101, %97 : vector<8x128xf32>
    %103 = arith.mulf %102, %97 : vector<8x128xf32>
    %104 = arith.mulf %103, %97 : vector<8x128xf32>
    %105 = arith.addf %97, %104 : vector<8x128xf32>
    %106 = vector.broadcast %100 : f32 to vector<8x128xf32>
    %107 = arith.mulf %106, %105 : vector<8x128xf32>
    %108 = math.tanh %107 : vector<8x128xf32>
    %cst_67 = arith.constant 1.000000e+00 : f32
    %109 = vector.broadcast %cst_67 : f32 to vector<8x128xf32>
    %110 = arith.addf %109, %108 : vector<8x128xf32>
    %111 = arith.mulf %99, %110 : vector<8x128xf32>
    %c0_68 = arith.constant 0 : index
    %c0_69 = arith.constant 0 : index
    %112 = vector.load %arg13[%c0_68, %c0_69] : memref<128x32xf32, #tpu.memory_space<vmem>>, vector<128x32xf32>
    %cst_70 = arith.constant dense<0.000000e+00> : vector<8x32xf32>
    %113 = tpu.matmul %111, %112, %cst_70 {dimension_numbers = #tpu.dot_dimension_numbers<[1], [0], [0], [1], [0, 0, 1, 1], [], []>} : vector<8x128xf32>, vector<128x32xf32>, vector<8x32xf32> -> vector<8x32xf32>
    %114 = arith.addf %92, %113 : vector<8x32xf32>
    %c0_71 = arith.constant 0 : index
    %c0_72 = arith.constant 0 : index
    %115 = vector.load %arg14[%c0_71, %c0_72] : memref<1x32xf32, #tpu.memory_space<vmem>>, vector<1x32xf32>
    %116 = vector.broadcast %115 : vector<1x32xf32> to vector<8x32xf32>
    %117 = arith.addf %114, %116 : vector<8x32xf32>
    %118 = arith.addf %69, %117 : vector<8x32xf32>
    %c0_73 = arith.constant 0 : index
    %c0_74 = arith.constant 0 : index
    %c0_75 = arith.constant 0 : index
    %119 = vector.load %arg17[%c0_73, %c0_74, %c0_75] : memref<1x8x32xf32, #tpu.memory_space<vmem>>, vector<1x8x32xf32>
    %120 = vector.shape_cast %119 : vector<1x8x32xf32> to vector<8x32xf32>
    %121 = vector.shape_cast %118 : vector<8x32xf32> to vector<1x8x32xf32>
    tpu.vector_store %arg17[%c0_73, %c0_74, %c0_75], %121 {strides = array<i32>} : memref<1x8x32xf32, #tpu.memory_space<vmem>>, vector<1x8x32xf32>,
    return
  }
  func.func @transform_0(%arg0: i32, %arg1: i32) -> (i32, i32, i32) {
    %c0_i32 = arith.constant 0 : i32
    %c0_i32_0 = arith.constant 0 : i32
    %c0_i32_1 = arith.constant 0 : i32
    return %arg0, %c0_i32, %c0_i32_0 : i32, i32, i32
  }
  func.func @transform_1(%arg0: i32, %arg1: i32) -> (i32, i32) {
    %c0_i32 = arith.constant 0 : i32
    %c0_i32_0 = arith.constant 0 : i32
    %c0_i32_1 = arith.constant 0 : i32
    return %c0_i32, %c0_i32_0 : i32, i32
  }
  func.func @transform_2(%arg0: i32, %arg1: i32) -> (i32, i32) {
    %c0_i32 = arith.constant 0 : i32
    %c0_i32_0 = arith.constant 0 : i32
    %c0_i32_1 = arith.constant 0 : i32
    return %c0_i32, %c0_i32_0 : i32, i32
  }
  func.func @transform_3(%arg0: i32, %arg1: i32) -> (i32, i32) {
    %c0_i32 = arith.constant 0 : i32
    %c0_i32_0 = arith.constant 0 : i32
    %c0_i32_1 = arith.constant 0 : i32
    return %c0_i32, %c0_i32_0 : i32, i32
  }
  func.func @transform_4(%arg0: i32, %arg1: i32) -> (i32, i32) {
    %c0_i32 = arith.constant 0 : i32
    %c0_i32_0 = arith.constant 0 : i32
    %c0_i32_1 = arith.constant 0 : i32
    return %c0_i32, %c0_i32_0 : i32, i32
  }
  func.func @transform_5(%arg0: i32, %arg1: i32) -> (i32, i32) {
    %c0_i32 = arith.constant 0 : i32
    %c0_i32_0 = arith.constant 0 : i32
    %c0_i32_1 = arith.constant 0 : i32
    return %c0_i32, %c0_i32_0 : i32, i32
  }
  func.func @transform_6(%arg0: i32, %arg1: i32) -> (i32, i32) {
    %c0_i32 = arith.constant 0 : i32
    %c0_i32_0 = arith.constant 0 : i32
    %c0_i32_1 = arith.constant 0 : i32
    return %c0_i32, %c0_i32_0 : i32, i32
  }
  func.func @transform_7(%arg0: i32, %arg1: i32) -> (i32, i32) {
    %c0_i32 = arith.constant 0 : i32
    %c0_i32_0 = arith.constant 0 : i32
    %c0_i32_1 = arith.constant 0 : i32
    return %c0_i32, %c0_i32_0 : i32, i32
  }
  func.func @transform_8(%arg0: i32, %arg1: i32) -> (i32, i32) {
    %c0_i32 = arith.constant 0 : i32
    %c0_i32_0 = arith.constant 0 : i32
    %c0_i32_1 = arith.constant 0 : i32
    return %c0_i32, %c0_i32_0 : i32, i32
  }
  func.func @transform_9(%arg0: i32, %arg1: i32) -> (i32, i32) {
    %c0_i32 = arith.constant 0 : i32
    %c0_i32_0 = arith.constant 0 : i32
    %c0_i32_1 = arith.constant 0 : i32
    return %c0_i32, %c0_i32_0 : i32, i32
  }
  func.func @transform_10(%arg0: i32, %arg1: i32) -> (i32, i32) {
    %c0_i32 = arith.constant 0 : i32
    %c0_i32_0 = arith.constant 0 : i32
    %c0_i32_1 = arith.constant 0 : i32
    return %c0_i32, %c0_i32_0 : i32, i32
  }
  func.func @transform_11(%arg0: i32, %arg1: i32) -> (i32, i32) {
    %c0_i32 = arith.constant 0 : i32
    %c0_i32_0 = arith.constant 0 : i32
    %c0_i32_1 = arith.constant 0 : i32
    return %c0_i32, %c0_i32_0 : i32, i32
  }
  func.func @transform_12(%arg0: i32, %arg1: i32) -> (i32, i32) {
    %c0_i32 = arith.constant 0 : i32
    %c0_i32_0 = arith.constant 0 : i32
    %c0_i32_1 = arith.constant 0 : i32
    return %c0_i32, %c0_i32_0 : i32, i32
  }
  func.func @transform_13(%arg0: i32, %arg1: i32) -> (i32, i32) {
    %c0_i32 = arith.constant 0 : i32
    %c0_i32_0 = arith.constant 0 : i32
    %c0_i32_1 = arith.constant 0 : i32
    return %c0_i32, %c0_i32_0 : i32, i32
  }
  func.func @transform_14(%arg0: i32, %arg1: i32) -> (i32, i32) {
    %c0_i32 = arith.constant 0 : i32
    %c0_i32_0 = arith.constant 0 : i32
    %c0_i32_1 = arith.constant 0 : i32
    return %c0_i32, %c0_i32_0 : i32, i32
  }
  func.func @transform_15(%arg0: i32, %arg1: i32) -> (i32, i32, i32) {
    %c0_i32 = arith.constant 0 : i32
    %c0_i32_0 = arith.constant 0 : i32
    return %arg0, %arg1, %c0_i32 : i32, i32, i32
  }
}

</mosaic_0001>

<llo_original>
// kernel: tpu_custom_call.1
$region0: #{tpu_custom_call.1}
  #allocation0 [shape = 'u32[]', space=smem, size = 0x4, offset = 0x4, fixed_abs, tag = 'smem constant byte address 0x4 - core index']
  #allocation1 [shape = 'u32[144,128]{1,0:T(1,128)}', space=vmem, size = 0x12000, scoped, tag = 'internal scratch']
  #allocation2 [shape = 'f32[1,8,32]{2,1,0:T(8,128)}', space=vmem, size = 0x1000, scoped, tag = 'scratch operand']
  #allocation3 [shape = 'f32[1,8,32]{2,1,0:T(8,128)}', space=vmem, size = 0x1000, scoped, tag = 'scratch operand']
  #allocation4 [shape = 'f32[1,8,32]{2,1,0:T(8,128)}', space=vmem, size = 0x1000, scoped, tag = 'scratch operand']
  #allocation5 [shape = 'f32[4,8,1]{2,1,0:T(8,128)}', space=vmem, size = 0x4000, scoped, tag = 'scratch operand']
  #allocation6 [shape = 'f32[4,8,1]{2,1,0:T(8,128)}', space=vmem, size = 0x4000, scoped, tag = 'scratch operand']
  #allocation7 [shape = 'f32[4,8,8]{2,1,0:T(8,128)}', space=vmem, size = 0x4000, scoped, tag = 'scratch operand']
  %s0 = inlined_call_operand.hbm [shape: f32[2,8,32], index: 0, kind: input, shape index: {}]
  %s1 = inlined_call_operand.vmem [shape: f32[32,32], index: 1, kind: input, shape index: {}]
  %s2 = inlined_call_operand.vmem [shape: f32[1,32], index: 2, kind: input, shape index: {}]
  %s3 = inlined_call_operand.vmem [shape: f32[32,32], index: 3, kind: input, shape index: {}]
  %s4 = inlined_call_operand.vmem [shape: f32[1,32], index: 4, kind: input, shape index: {}]
  %s5 = inlined_call_operand.vmem [shape: f32[32,32], index: 5, kind: input, shape index: {}]
  %s6 = inlined_call_operand.vmem [shape: f32[1,32], index: 6, kind: input, shape index: {}]
  %s7 = inlined_call_operand.vmem [shape: f32[32,32], index: 7, kind: input, shape index: {}]
  %s8 = inlined_call_operand.vmem [shape: f32[1,32], index: 8, kind: input, shape index: {}]
  %s9 = inlined_call_operand.vmem [shape: f32[32,128], index: 9, kind: input, shape index: {}]
  %s10 = inlined_call_operand.vmem [shape: f32[1,128], index: 10, kind: input, shape index: {}]
  %s11 = inlined_call_operand.vmem [shape: f32[128,32], index: 11, kind: input, shape index: {}]
  %s12 = inlined_call_operand.vmem [shape: f32[1,32], index: 12, kind: input, shape index: {}]
  %s13 = inlined_call_operand.vmem [shape: f32[1,32], index: 13, kind: input, shape index: {}]
  %s14 = inlined_call_operand.vmem [shape: f32[1,32], index: 14, kind: input, shape index: {}]
  %s15 = inlined_call_operand.hbm [shape: f32[2,8,32], index: 15, kind: output, shape index: {}]
  %s16 = sld [smem:[#allocation0]]
  $region108: #{tpu_custom_call.1} parent=0
    _
  %s18 = ssub.s32 1, %s16
  %s19 = scalar_select 0, %s18, %s16
  $region1: #{tpu_custom_call.1} parent=0
    #allocation8 [shape = 'u8[8192]{0}', space=vmem, size = 0x2000, scoped, tag = 'input window, operand 0']
    #allocation9 [shape = 's32[2]{0}', space=sflag, size = 0x8, scoped, tag = 'scoped memory for tpu_custom_call.1']
    #allocation10 [shape = 's32[2]{0}', space=sflag, size = 0x8, scoped, tag = 'scoped memory for tpu_custom_call.1']
    #allocation11 [shape = 'u8[8192]{0}', space=vmem, size = 0x2000, scoped, tag = 'output window, operand 0']
    %20 = vsyncpa [#allocation9], 0
    %s21 = scalar_lea.sflag [#allocation9], 1
    %22 = vsyncpa %s21, 0
    %23 = vsyncpa [#allocation10], 0
    %s24 = scalar_lea.sflag [#allocation10], 1
    %25 = vsyncpa %s24, 0
    loop: start=0, step=1, limit=4
    $region2: #{tpu_custom_call.1} parent=1 // loop_pre_header
      _
    $region3: #{tpu_custom_call.1} parent=1 // loop_header
      %s27 = sphi 0, %s31
      %p28 = scmp.ge.s32.totalorder %s27, 4
      %s34 = sphi 0, %s46
      %s35 = sphi 0, %s42
      %s36 = sphi 0, %s34
      %s37 = sphi 0, %s35
      %s38 = sphi 0, %s36
      %s39 = sphi 0, %s37
      %s49 = sphi 0, %s51
      %s52 = sphi 0, %s49
      %s53 = sphi 0, %s52
      %s69 = sphi 0, %s53
      %s73 = sphi 0, %s73
      %s75 = sphi 0, %s73
      %s76 = sphi 0, %s75
      %s90 = sphi 0, %s76
      %s94 = sphi 0, %s94
      %s96 = sphi 0, %s94
      %s97 = sphi 0, %s96
      %s111 = sphi 0, %s97
      %s115 = sphi 0, %s115
      %s117 = sphi 0, %s115
      %s118 = sphi 0, %s117
      %s132 = sphi 0, %s118
      %s136 = sphi 0, %s136
      %s138 = sphi 0, %s136
      %s139 = sphi 0, %s138
      %s153 = sphi 0, %s139
      %s157 = sphi 0, %s157
      %s159 = sphi 0, %s157
      %s160 = sphi 0, %s159
      %s174 = sphi 0, %s160
      %s178 = sphi 0, %s178
      %s180 = sphi 0, %s178
      %s181 = sphi 0, %s180
      %s195 = sphi 0, %s181
      %s199 = sphi 0, %s199
      %s201 = sphi 0, %s199
      %s202 = sphi 0, %s201
      %s216 = sphi 0, %s202
      %s220 = sphi 0, %s220
      %s222 = sphi 0, %s220
      %s223 = sphi 0, %s222
      %s237 = sphi 0, %s223
      %s241 = sphi 0, %s241
      %s243 = sphi 0, %s241
      %s244 = sphi 0, %s243
      %s258 = sphi 0, %s244
      %s262 = sphi 0, %s262
      %s264 = sphi 0, %s262
      %s265 = sphi 0, %s264
      %s279 = sphi 0, %s265
      %s283 = sphi 0, %s283
      %s285 = sphi 0, %s283
      %s286 = sphi 0, %s285
      %s300 = sphi 0, %s286
      %s304 = sphi 0, %s304
      %s306 = sphi 0, %s304
      %s307 = sphi 0, %s306
      %s321 = sphi 0, %s307
      %s325 = sphi 0, %s325
      %s327 = sphi 0, %s325
      %s328 = sphi 0, %s327
      %s342 = sphi 0, %s328
      %s346 = sphi 0, %s346
      %s348 = sphi 0, %s346
      %s349 = sphi 0, %s348
      %s363 = sphi 0, %s349
      %s371 = sphi 0, %s373
      %s374 = sphi 0, %s371
      %s375 = sphi 0, %s374
      %s391 = sphi 0, %s375
    $region4: #{tpu_custom_call.1} parent=1 // loop_header_branch
      %30 = sbr.rel (%p28) target = $region8
    $region5: #{tpu_custom_call.1} parent=1 // loop_body
      %s32 = ssub.s32 %s27, 1
      %s33 = ssub.s32 %s27, 2
      %s40 = sadd.s32 1, %s35
      %p41 = scmp.ge.s32.totalorder %s40, 1
      %s42 = scalar_select %p41, 0, %s40
      %s43 = sadd.s32 1, %s34
      %s44 = scalar_select %p41, %s43, %s34
      %p45 = scmp.ge.s32.totalorder %s44, 2
      %s46 = scalar_select %p45, 0, %s44
      %s47 = ssub.s32 %s34, %s46
      %p48 = scmp.eq.s32.totalorder %s47, 0
      %s50 = sadd.s32 %s49, 1
      %s51 = scalar_select %p48, %s49, %s50
      %p54 = pneg %p48
      %p55 = scmp.eq.s32.totalorder %s27, 1
      %p56 = por %p54, %p55
      %p57 = scmp.ne.s32.totalorder %s49, %s52
      %p58 = scmp.eq.s32.totalorder %s27, 0
      %p59 = por %p57, %p58
      %p60 = scmp.ne.s32.totalorder %s49, %s52
      %p61 = scmp.eq.s32.totalorder %s32, 1
      %p62 = por %p60, %p61
      %p63 = scmp.ne.s32.totalorder %s52, %s53
      %p64 = scmp.eq.s32.totalorder %s32, 0
      %p65 = por %p63, %p64
      %p66 = scmp.ne.s32.totalorder %s52, %s53
      %p67 = scmp.eq.s32.totalorder %s33, 1
      %p68 = por %p66, %p67
      %p70 = scmp.ne.s32.totalorder %s53, %s69
      %p71 = scmp.eq.s32.totalorder %s33, 0
      %p72 = por %p70, %p71
      %s74 = sadd.s32 %s73, 1
      %p77 = scmp.eq.s32.totalorder %s27, 1
      %p78 = scmp.ne.s32.totalorder %s73, %s75
      %p79 = scmp.eq.s32.totalorder %s27, 0
      %p80 = por %p78, %p79
      %p81 = scmp.ne.s32.totalorder %s73, %s75
      %p82 = scmp.eq.s32.totalorder %s32, 1
      %p83 = por %p81, %p82
      %p84 = scmp.ne.s32.totalorder %s75, %s76
      %p85 = scmp.eq.s32.totalorder %s32, 0
      %p86 = por %p84, %p85
      %p87 = scmp.ne.s32.totalorder %s75, %s76
      %p88 = scmp.eq.s32.totalorder %s33, 1
      %p89 = por %p87, %p88
      %p91 = scmp.ne.s32.totalorder %s76, %s90
      %p92 = scmp.eq.s32.totalorder %s33, 0
      %p93 = por %p91, %p92
      %s95 = sadd.s32 %s94, 1
      %p98 = scmp.eq.s32.totalorder %s27, 1
      %p99 = scmp.ne.s32.totalorder %s94, %s96
      %p100 = scmp.eq.s32.totalorder %s27, 0
      %p101 = por %p99, %p100
      %p102 = scmp.ne.s32.totalorder %s94, %s96
      %p103 = scmp.eq.s32.totalorder %s32, 1
      %p104 = por %p102, %p103
      %p105 = scmp.ne.s32.totalorder %s96, %s97
      %p106 = scmp.eq.s32.totalorder %s32, 0
      %p107 = por %p105, %p106
      %p108 = scmp.ne.s32.totalorder %s96, %s97
      %p109 = scmp.eq.s32.totalorder %s33, 1
      %p110 = por %p108, %p109
      %p112 = scmp.ne.s32.totalorder %s97, %s111
      %p113 = scmp.eq.s32.totalorder %s33, 0
      %p114 = por %p112, %p113
      %s116 = sadd.s32 %s115, 1
      %p119 = scmp.eq.s32.totalorder %s27, 1
      %p120 = scmp.ne.s32.totalorder %s115, %s117
      %p121 = scmp.eq.s32.totalorder %s27, 0
      %p122 = por %p120, %p121
      %p123 = scmp.ne.s32.totalorder %s115, %s117
      %p124 = scmp.eq.s32.totalorder %s32, 1
      %p125 = por %p123, %p124
      %p126 = scmp.ne.s32.totalorder %s117, %s118
      %p127 = scmp.eq.s32.totalorder %s32, 0
      %p128 = por %p126, %p127
      %p129 = scmp.ne.s32.totalorder %s117, %s118
      %p130 = scmp.eq.s32.totalorder %s33, 1
      %p131 = por %p129, %p130
      %p133 = scmp.ne.s32.totalorder %s118, %s132
      %p134 = scmp.eq.s32.totalorder %s33, 0
      %p135 = por %p133, %p134
      %s137 = sadd.s32 %s136, 1
      %p140 = scmp.eq.s32.totalorder %s27, 1
      %p141 = scmp.ne.s32.totalorder %s136, %s138
      %p142 = scmp.eq.s32.totalorder %s27, 0
      %p143 = por %p141, %p142
      %p144 = scmp.ne.s32.totalorder %s136, %s138
      %p145 = scmp.eq.s32.totalorder %s32, 1
      %p146 = por %p144, %p145
      %p147 = scmp.ne.s32.totalorder %s138, %s139
      %p148 = scmp.eq.s32.totalorder %s32, 0
      %p149 = por %p147, %p148
      %p150 = scmp.ne.s32.totalorder %s138, %s139
      %p151 = scmp.eq.s32.totalorder %s33, 1
      %p152 = por %p150, %p151
      %p154 = scmp.ne.s32.totalorder %s139, %s153
      %p155 = scmp.eq.s32.totalorder %s33, 0
      %p156 = por %p154, %p155
      %s158 = sadd.s32 %s157, 1
      %p161 = scmp.eq.s32.totalorder %s27, 1
      %p162 = scmp.ne.s32.totalorder %s157, %s159
      %p163 = scmp.eq.s32.totalorder %s27, 0
      %p164 = por %p162, %p163
      %p165 = scmp.ne.s32.totalorder %s157, %s159
      %p166 = scmp.eq.s32.totalorder %s32, 1
      %p167 = por %p165, %p166
      %p168 = scmp.ne.s32.totalorder %s159, %s160
      %p169 = scmp.eq.s32.totalorder %s32, 0
      %p170 = por %p168, %p169
      %p171 = scmp.ne.s32.totalorder %s159, %s160
      %p172 = scmp.eq.s32.totalorder %s33, 1
      %p173 = por %p171, %p172
      %p175 = scmp.ne.s32.totalorder %s160, %s174
      %p176 = scmp.eq.s32.totalorder %s33, 0
      %p177 = por %p175, %p176
      %s179 = sadd.s32 %s178, 1
      %p182 = scmp.eq.s32.totalorder %s27, 1
      %p183 = scmp.ne.s32.totalorder %s178, %s180
      %p184 = scmp.eq.s32.totalorder %s27, 0
      %p185 = por %p183, %p184
      %p186 = scmp.ne.s32.totalorder %s178, %s180
      %p187 = scmp.eq.s32.totalorder %s32, 1
      %p188 = por %p186, %p187
      %p189 = scmp.ne.s32.totalorder %s180, %s181
      %p190 = scmp.eq.s32.totalorder %s32, 0
      %p191 = por %p189, %p190
      %p192 = scmp.ne.s32.totalorder %s180, %s181
      %p193 = scmp.eq.s32.totalorder %s33, 1
      %p194 = por %p192, %p193
      %p196 = scmp.ne.s32.totalorder %s181, %s195
      %p197 = scmp.eq.s32.totalorder %s33, 0
      %p198 = por %p196, %p197
      %s200 = sadd.s32 %s199, 1
      %p203 = scmp.eq.s32.totalorder %s27, 1
      %p204 = scmp.ne.s32.totalorder %s199, %s201
      %p205 = scmp.eq.s32.totalorder %s27, 0
      %p206 = por %p204, %p205
      %p207 = scmp.ne.s32.totalorder %s199, %s201
      %p208 = scmp.eq.s32.totalorder %s32, 1
      %p209 = por %p207, %p208
      %p210 = scmp.ne.s32.totalorder %s201, %s202
      %p211 = scmp.eq.s32.totalorder %s32, 0
      %p212 = por %p210, %p211
      %p213 = scmp.ne.s32.totalorder %s201, %s202
      %p214 = scmp.eq.s32.totalorder %s33, 1
      %p215 = por %p213, %p214
      %p217 = scmp.ne.s32.totalorder %s202, %s216
      %p218 = scmp.eq.s32.totalorder %s33, 0
      %p219 = por %p217, %p218
      %s221 = sadd.s32 %s220, 1
      %p224 = scmp.eq.s32.totalorder %s27, 1
      %p225 = scmp.ne.s32.totalorder %s220, %s222
      %p226 = scmp.eq.s32.totalorder %s27, 0
      %p227 = por %p225, %p226
      %p228 = scmp.ne.s32.totalorder %s220, %s222
      %p229 = scmp.eq.s32.totalorder %s32, 1
      %p230 = por %p228, %p229
      %p231 = scmp.ne.s32.totalorder %s222, %s223
      %p232 = scmp.eq.s32.totalorder %s32, 0
      %p233 = por %p231, %p232
      %p234 = scmp.ne.s32.totalorder %s222, %s223
      %p235 = scmp.eq.s32.totalorder %s33, 1
      %p236 = por %p234, %p235
      %p238 = scmp.ne.s32.totalorder %s223, %s237
      %p239 = scmp.eq.s32.totalorder %s33, 0
      %p240 = por %p238, %p239
      %s242 = sadd.s32 %s241, 1
      %p245 = scmp.eq.s32.totalorder %s27, 1
      %p246 = scmp.ne.s32.totalorder %s241, %s243
      %p247 = scmp.eq.s32.totalorder %s27, 0
      %p248 = por %p246, %p247
      %p249 = scmp.ne.s32.totalorder %s241, %s243
      %p250 = scmp.eq.s32.totalorder %s32, 1
      %p251 = por %p249, %p250
      %p252 = scmp.ne.s32.totalorder %s243, %s244
      %p253 = scmp.eq.s32.totalorder %s32, 0
      %p254 = por %p252, %p253
      %p255 = scmp.ne.s32.totalorder %s243, %s244
      %p256 = scmp.eq.s32.totalorder %s33, 1
      %p257 = por %p255, %p256
      %p259 = scmp.ne.s32.totalorder %s244, %s258
      %p260 = scmp.eq.s32.totalorder %s33, 0
      %p261 = por %p259, %p260
      %s263 = sadd.s32 %s262, 1
      %p266 = scmp.eq.s32.totalorder %s27, 1
      %p267 = scmp.ne.s32.totalorder %s262, %s264
      %p268 = scmp.eq.s32.totalorder %s27, 0
      %p269 = por %p267, %p268
      %p270 = scmp.ne.s32.totalorder %s262, %s264
      %p271 = scmp.eq.s32.totalorder %s32, 1
      %p272 = por %p270, %p271
      %p273 = scmp.ne.s32.totalorder %s264, %s265
      %p274 = scmp.eq.s32.totalorder %s32, 0
      %p275 = por %p273, %p274
      %p276 = scmp.ne.s32.totalorder %s264, %s265
      %p277 = scmp.eq.s32.totalorder %s33, 1
      %p278 = por %p276, %p277
      %p280 = scmp.ne.s32.totalorder %s265, %s279
      %p281 = scmp.eq.s32.totalorder %s33, 0
      %p282 = por %p280, %p281
      %s284 = sadd.s32 %s283, 1
      %p287 = scmp.eq.s32.totalorder %s27, 1
      %p288 = scmp.ne.s32.totalorder %s283, %s285
      %p289 = scmp.eq.s32.totalorder %s27, 0
      %p290 = por %p288, %p289
      %p291 = scmp.ne.s32.totalorder %s283, %s285
      %p292 = scmp.eq.s32.totalorder %s32, 1
      %p293 = por %p291, %p292
      %p294 = scmp.ne.s32.totalorder %s285, %s286
      %p295 = scmp.eq.s32.totalorder %s32, 0
      %p296 = por %p294, %p295
      %p297 = scmp.ne.s32.totalorder %s285, %s286
      %p298 = scmp.eq.s32.totalorder %s33, 1
      %p299 = por %p297, %p298
      %p301 = scmp.ne.s32.totalorder %s286, %s300
      %p302 = scmp.eq.s32.totalorder %s33, 0
      %p303 = por %p301, %p302
      %s305 = sadd.s32 %s304, 1
      %p308 = scmp.eq.s32.totalorder %s27, 1
      %p309 = scmp.ne.s32.totalorder %s304, %s306
      %p310 = scmp.eq.s32.totalorder %s27, 0
      %p311 = por %p309, %p310
      %p312 = scmp.ne.s32.totalorder %s304, %s306
      %p313 = scmp.eq.s32.totalorder %s32, 1
      %p314 = por %p312, %p313
      %p315 = scmp.ne.s32.totalorder %s306, %s307
      %p316 = scmp.eq.s32.totalorder %s32, 0
      %p317 = por %p315, %p316
      %p318 = scmp.ne.s32.totalorder %s306, %s307
      %p319 = scmp.eq.s32.totalorder %s33, 1
      %p320 = por %p318, %p319
      %p322 = scmp.ne.s32.totalorder %s307, %s321
      %p323 = scmp.eq.s32.totalorder %s33, 0
      %p324 = por %p322, %p323
      %s326 = sadd.s32 %s325, 1
      %p329 = scmp.eq.s32.totalorder %s27, 1
      %p330 = scmp.ne.s32.totalorder %s325, %s327
      %p331 = scmp.eq.s32.totalorder %s27, 0
      %p332 = por %p330, %p331
      %p333 = scmp.ne.s32.totalorder %s325, %s327
      %p334 = scmp.eq.s32.totalorder %s32, 1
      %p335 = por %p333, %p334
      %p336 = scmp.ne.s32.totalorder %s327, %s328
      %p337 = scmp.eq.s32.totalorder %s32, 0
      %p338 = por %p336, %p337
      %p339 = scmp.ne.s32.totalorder %s327, %s328
      %p340 = scmp.eq.s32.totalorder %s33, 1
      %p341 = por %p339, %p340
      %p343 = scmp.ne.s32.totalorder %s328, %s342
      %p344 = scmp.eq.s32.totalorder %s33, 0
      %p345 = por %p343, %p344
      %s347 = sadd.s32 %s346, 1
      %p350 = scmp.eq.s32.totalorder %s27, 1
      %p351 = scmp.ne.s32.totalorder %s346, %s348
      %p352 = scmp.eq.s32.totalorder %s27, 0
      %p353 = por %p351, %p352
      %p354 = scmp.ne.s32.totalorder %s346, %s348
      %p355 = scmp.eq.s32.totalorder %s32, 1
      %p356 = por %p354, %p355
      %p357 = scmp.ne.s32.totalorder %s348, %s349
      %p358 = scmp.eq.s32.totalorder %s32, 0
      %p359 = por %p357, %p358
      %p360 = scmp.ne.s32.totalorder %s348, %s349
      %p361 = scmp.eq.s32.totalorder %s33, 1
      %p362 = por %p360, %p361
      %p364 = scmp.ne.s32.totalorder %s349, %s363
      %p365 = scmp.eq.s32.totalorder %s33, 0
      %p366 = por %p364, %p365
      %s367 = ssub.s32 %s34, %s46
      %s368 = ssub.s32 %s35, %s42
      %s369 = sor.u32 %s367, %s368
      %p370 = scmp.eq.s32.totalorder %s369, 0
      %s372 = sadd.s32 %s371, 1
      %s373 = scalar_select %p370, %s371, %s372
      %p376 = pneg %p370
      %p377 = scmp.eq.s32.totalorder %s27, 1
      %p378 = por %p376, %p377
      %p379 = scmp.ne.s32.totalorder %s371, %s374
      %p380 = scmp.eq.s32.totalorder %s27, 0
      %p381 = por %p379, %p380
      %p382 = scmp.ne.s32.totalorder %s371, %s374
      %p383 = scmp.eq.s32.totalorder %s32, 1
      %p384 = por %p382, %p383
      %p385 = scmp.ne.s32.totalorder %s374, %s375
      %p386 = scmp.eq.s32.totalorder %s32, 0
      %p387 = por %p385, %p386
      %p388 = scmp.ne.s32.totalorder %s374, %s375
      %p389 = scmp.eq.s32.totalorder %s33, 1
      %p390 = por %p388, %p389
      %p392 = scmp.ne.s32.totalorder %s375, %s391
      %p393 = scmp.eq.s32.totalorder %s33, 0
      %p394 = por %p392, %p393
      %p395 = scmp.le.s32.totalorder 1, %s27
      %p396 = scmp.lt.s32.totalorder %s27, 3
      %p397 = pnand %p395, %p396
      %p398 = pneg %p397
      // Predicated region
      $region9: #{tpu_custom_call.1} parent=5 // pred_check
        _
      $region10: #{tpu_custom_call.1} parent=5 // pred_check_branch
        %400 = sbr.rel (%p397) target = $region12
      $region11: #{tpu_custom_call.1} parent=5 // pred_region
        %s401 = ssub.s32 %s27, 1
        // Predicated region
        $region13: #{tpu_custom_call.1} parent=11 // pred_check
          %p402 = pneg %p86
        $region14: #{tpu_custom_call.1} parent=11 // pred_check_branch
          %404 = sbr.rel (%p402) target = $region16
        $region15: #{tpu_custom_call.1} parent=11 // pred_region
          _
        $region16: #{tpu_custom_call.1} parent=11 // pred_fallthru
          _
        // Predicated region
        $region17: #{tpu_custom_call.1} parent=11 // pred_check
          %p405 = pneg %p107
        $region18: #{tpu_custom_call.1} parent=11 // pred_check_branch
          %407 = sbr.rel (%p405) target = $region20
        $region19: #{tpu_custom_call.1} parent=11 // pred_region
          _
        $region20: #{tpu_custom_call.1} parent=11 // pred_fallthru
          _
        // Predicated region
        $region21: #{tpu_custom_call.1} parent=11 // pred_check
          %p408 = pneg %p128
        $region22: #{tpu_custom_call.1} parent=11 // pred_check_branch
          %410 = sbr.rel (%p408) target = $region24
        $region23: #{tpu_custom_call.1} parent=11 // pred_region
          _
        $region24: #{tpu_custom_call.1} parent=11 // pred_fallthru
          _
        // Predicated region
        $region25: #{tpu_custom_call.1} parent=11 // pred_check
          %p411 = pneg %p149
        $region26: #{tpu_custom_call.1} parent=11 // pred_check_branch
          %413 = sbr.rel (%p411) target = $region28
        $region27: #{tpu_custom_call.1} parent=11 // pred_region
          _
        $region28: #{tpu_custom_call.1} parent=11 // pred_fallthru
          _
        // Predicated region
        $region29: #{tpu_custom_call.1} parent=11 // pred_check
          %p414 = pneg %p170
        $region30: #{tpu_custom_call.1} parent=11 // pred_check_branch
          %416 = sbr.rel (%p414) target = $region32
        $region31: #{tpu_custom_call.1} parent=11 // pred_region
          _
        $region32: #{tpu_custom_call.1} parent=11 // pred_fallthru
          _
        // Predicated region
        $region33: #{tpu_custom_call.1} parent=11 // pred_check
          %p417 = pneg %p191
        $region34: #{tpu_custom_call.1} parent=11 // pred_check_branch
          %419 = sbr.rel (%p417) target = $region36
        $region35: #{tpu_custom_call.1} parent=11 // pred_region
          _
        $region36: #{tpu_custom_call.1} parent=11 // pred_fallthru
          _
        // Predicated region
        $region37: #{tpu_custom_call.1} parent=11 // pred_check
          %p420 = pneg %p212
        $region38: #{tpu_custom_call.1} parent=11 // pred_check_branch
          %422 = sbr.rel (%p420) target = $region40
        $region39: #{tpu_custom_call.1} parent=11 // pred_region
          _
        $region40: #{tpu_custom_call.1} parent=11 // pred_fallthru
          _
        // Predicated region
        $region41: #{tpu_custom_call.1} parent=11 // pred_check
          %p423 = pneg %p233
        $region42: #{tpu_custom_call.1} parent=11 // pred_check_branch
          %425 = sbr.rel (%p423) target = $region44
        $region43: #{tpu_custom_call.1} parent=11 // pred_region
          _
        $region44: #{tpu_custom_call.1} parent=11 // pred_fallthru
          _
        // Predicated region
        $region45: #{tpu_custom_call.1} parent=11 // pred_check
          %p426 = pneg %p254
        $region46: #{tpu_custom_call.1} parent=11 // pred_check_branch
          %428 = sbr.rel (%p426) target = $region48
        $region47: #{tpu_custom_call.1} parent=11 // pred_region
          _
        $region48: #{tpu_custom_call.1} parent=11 // pred_fallthru
          _
        // Predicated region
        $region49: #{tpu_custom_call.1} parent=11 // pred_check
          %p429 = pneg %p275
        $region50: #{tpu_custom_call.1} parent=11 // pred_check_branch
          %431 = sbr.rel (%p429) target = $region52
        $region51: #{tpu_custom_call.1} parent=11 // pred_region
          _
        $region52: #{tpu_custom_call.1} parent=11 // pred_fallthru
          _
        // Predicated region
        $region53: #{tpu_custom_call.1} parent=11 // pred_check
          %p432 = pneg %p296
        $region54: #{tpu_custom_call.1} parent=11 // pred_check_branch
          %434 = sbr.rel (%p432) target = $region56
        $region55: #{tpu_custom_call.1} parent=11 // pred_region
          _
        $region56: #{tpu_custom_call.1} parent=11 // pred_fallthru
          _
        // Predicated region
        $region57: #{tpu_custom_call.1} parent=11 // pred_check
          %p435 = pneg %p317
        $region58: #{tpu_custom_call.1} parent=11 // pred_check_branch
          %437 = sbr.rel (%p435) target = $region60
        $region59: #{tpu_custom_call.1} parent=11 // pred_region
          _
        $region60: #{tpu_custom_call.1} parent=11 // pred_fallthru
          _
        // Predicated region
        $region61: #{tpu_custom_call.1} parent=11 // pred_check
          %p438 = pneg %p338
        $region62: #{tpu_custom_call.1} parent=11 // pred_check_branch
          %440 = sbr.rel (%p438) target = $region64
        $region63: #{tpu_custom_call.1} parent=11 // pred_region
          _
        $region64: #{tpu_custom_call.1} parent=11 // pred_fallthru
          _
        // Predicated region
        $region65: #{tpu_custom_call.1} parent=11 // pred_check
          %p441 = pneg %p359
        $region66: #{tpu_custom_call.1} parent=11 // pred_check_branch
          %443 = sbr.rel (%p441) target = $region68
        $region67: #{tpu_custom_call.1} parent=11 // pred_region
          _
        $region68: #{tpu_custom_call.1} parent=11 // pred_fallthru
          _
      $region12: #{tpu_custom_call.1} parent=5 // pred_fallthru
        _
      %p444 = scmp.lt.s32.totalorder %s27, 2
      // Predicated region
      $region69: #{tpu_custom_call.1} parent=5 // pred_check
        %p445 = pneg %p444
      $region70: #{tpu_custom_call.1} parent=5 // pred_check_branch
        %447 = sbr.rel (%p445) target = $region72
      $region71: #{tpu_custom_call.1} parent=5 // pred_region
        // Predicated region
        $region73: #{tpu_custom_call.1} parent=71 // pred_check
          %p448 = pneg %p59
        $region74: #{tpu_custom_call.1} parent=71 // pred_check_branch
          %450 = sbr.rel (%p448) target = $region76
        $region75: #{tpu_custom_call.1} parent=71 // pred_region
          %s451 = sand.u32 %s49, 1
          %s452 = scalar_lea.sflag [#allocation9], %s451
          %s453 = sand.u32 %s49, 1
          %s454 = smul.addr %s453, 8
          %s455 = scalar_lea.vmem [#allocation8], %s454
          %s457 = ssub.s32 128, 128
          %458 = vsyncadd %s452, %s457
          %s459 = smul.addr %s34, 128
          %s460 = scalar_lea.hbm %s0, %s459
          %s462 = sshll.u32 %s455, 4
          %s463 = int_to_ptr.vmem [resolvable:$true] %s462
          %465 = dma.hbm_to_vmem [thread:$0]  %s460, 128, %s463, %s452
        $region76: #{tpu_custom_call.1} parent=71 // pred_fallthru
          _
      $region72: #{tpu_custom_call.1} parent=5 // pred_fallthru
        _
      %p466 = scmp.le.s32.totalorder 1, %s27
      %p467 = scmp.lt.s32.totalorder %s27, 3
      %p468 = pnand %p466, %p467
      %p469 = pneg %p468
      // Predicated region
      $region77: #{tpu_custom_call.1} parent=5 // pred_check
        _
      $region78: #{tpu_custom_call.1} parent=5 // pred_check_branch
        %471 = sbr.rel (%p468) target = $region80
      $region79: #{tpu_custom_call.1} parent=5 // pred_region
        %s472 = ssub.s32 %s27, 1
        %s473 = sand.u32 %s52, 1
        %s474 = scalar_lea.sflag [#allocation9], %s473
        %s475 = sand.u32 %s52, 1
        %s476 = smul.addr %s475, 8
        %s477 = scalar_lea.vmem [#allocation8], %s476
        // Predicated region
        $region81: #{tpu_custom_call.1} parent=79 // pred_check
          %p478 = pneg %p65
        $region82: #{tpu_custom_call.1} parent=79 // pred_check_branch
          %480 = sbr.rel (%p478) target = $region84
        $region83: #{tpu_custom_call.1} parent=79 // pred_region
          %481 = dma.done %s474, 128
        $region84: #{tpu_custom_call.1} parent=79 // pred_fallthru
          _
        %s482 = sand.u32 %s52, 1
        %s483 = scalar_lea.sflag [#allocation9], %s482
        %s484 = sand.u32 %s52, 1
        %s485 = smul.addr %s484, 8
        %s486 = scalar_lea.vmem [#allocation8], %s485
        %p487 = pneg %p65
        %p488 = pneg %p62
        %p489 = pneg %p86
        %p490 = pneg %p83
        %p491 = pneg %p107
        %p492 = pneg %p104
        %p493 = pneg %p128
        %p494 = pneg %p125
        %p495 = pneg %p149
        %p496 = pneg %p146
        %p497 = pneg %p170
        %p498 = pneg %p167
        %p499 = pneg %p191
        %p500 = pneg %p188
        %p501 = pneg %p212
        %p502 = pneg %p209
        %p503 = pneg %p233
        %p504 = pneg %p230
        %p505 = pneg %p254
        %p506 = pneg %p251
        %p507 = pneg %p275
        %p508 = pneg %p272
        %p509 = pneg %p296
        %p510 = pneg %p293
        %p511 = pneg %p317
        %p512 = pneg %p314
        %p513 = pneg %p338
        %p514 = pneg %p335
        %p515 = pneg %p359
        %p516 = pneg %p356
        %p517 = pneg %p387
        %p518 = pneg %p384
        %s519 = sand.u32 %s374, 1
        %s520 = scalar_lea.sflag [#allocation10], %s519
        %s521 = sand.u32 %s374, 1
        %s522 = smul.addr %s521, 8
        %s523 = scalar_lea.vmem [#allocation11], %s522
        %s524 = smul.u32 %s37, 8
        %v525 = vld [vmem:[%s13] sm:$0x1]
        %v526 = vld [vmem:[%s14] sm:$0x1]
        %p527 = scmp.eq.s32.totalorder %s37, 0
        // Predicated region
        $region85: #{tpu_custom_call.1} parent=79 // pred_check
          %p528 = pneg %p527
        $region86: #{tpu_custom_call.1} parent=79 // pred_check_branch
          %530 = sbr.rel (%p528) target = $region88
        $region87: #{tpu_custom_call.1} parent=79 // pred_region
          %v531 = vld [vmem:[%s3] sm:$0xff]
          %v532 = vld [vmem:[%s3 + $0x8] sm:$0xff]
          %v533 = vld [vmem:[%s3 + $0x10] sm:$0xff]
          %v534 = vld [vmem:[%s3 + $0x18] sm:$0xff]
          %v535 = vld [vmem:[%s5] sm:$0xff]
          %v536 = vld [vmem:[%s5 + $0x8] sm:$0xff]
          %v537 = vld [vmem:[%s5 + $0x10] sm:$0xff]
          %v538 = vld [vmem:[%s5 + $0x18] sm:$0xff]
          %v539 = vld [vmem:[%s4] sm:$0x1]
          %v540 = vld [vmem:[%s6] sm:$0x1]
          %v541 = vld [vmem:[%s477] sm:$0xff]
          %vm542 = vcmask 261120
          %v543 = vsel %vm542, %v541, 0.0
          %544 = vadd.xlane.f32.xlu0 %v543
          %v545 = vpop.xlane.xlu0 %544
          %v546 = vrcp.pop 32.0
          %v547 = vmul.f32 %v545, %v546
          %v548 = vsub.f32 %v541, %v547
          %v549 = vmul.f32 %v548, %v548
          %v550 = vsel %vm542, %v549, 0.0
          %551 = vadd.xlane.f32.xlu0 %v550
          %v552 = vpop.xlane.xlu0 %551
          %v553 = vmul.f32 %v552, %v546
          %v554 = vadd.f32 %v553, 1e-05
          %v555 = vrsqrt.pop %v554
          %v556 = vmul.f32 %v548, %v555
          %v558 = vlaneseq
          %v559 = vshrl.u32 %v558, 7
          %v560 = vsub.s32 0, %v559
          %v561 = vrot.slane %v525, %v560
          %v563 = vmul.f32 %v556, %v561
          %v565 = vlaneseq
          %v566 = vshrl.u32 %v565, 7
          %v567 = vsub.s32 0, %v566
          %v568 = vrot.slane %v526, %v567
          %v570 = vadd.f32 %v563, %v568
          %571 = vst.msk [vmem:[#allocation2] sm:$0xff] %vm542, %v570
          %v573 = vlaneseq
          %v574 = vshrl.u32 %v573, 7
          %v575 = vsub.s32 0, %v574
          %v576 = vrot.slane %v539, %v575
          %v579 = vsel %vm542, %v570, 0
          %581 = vmatprep.subr.mxu0 0.0
          %582 = vmatpush1.msra.mxu0 %v531
          %583 = vmatprep.subr.mxu0 0.0
          %584 = vmatpush1.msra.mxu0 %v532
          %585 = vmatprep.subr.mxu0 0.0
          %586 = vmatpush1.msra.mxu0 %v533
          %587 = vmatprep.subr.mxu0 0.0
          %588 = vmatpush1.msra.mxu0 %v534
          %589 = vmatprep.subr.mxu0 0.0
          %590 = vmatpush1.msra.mxu0 0.0
          %591 = vmatprep.subr.mxu0 0.0
          %592 = vmatpush1.msra.mxu0 0.0
          %593 = vmatprep.subr.mxu0 0.0
          %594 = vmatpush1.msra.mxu0 0.0
          %595 = vmatprep.subr.mxu0 0.0
          %596 = vmatpush1.msra.mxu0 0.0
          %597 = vmatprep.subr.mxu0 0.0
          %598 = vmatpush1.msra.mxu0 0.0
          %599 = vmatprep.subr.mxu0 0.0
          %600 = vmatpush1.msra.mxu0 0.0
          %601 = vmatprep.subr.mxu0 0.0
          %602 = vmatpush1.msra.mxu0 0.0
          %603 = vmatprep.subr.mxu0 0.0
          %604 = vmatpush1.msra.mxu0 0.0
          %605 = vmatprep.subr.mxu0 0.0
          %606 = vmatpush1.msra.mxu0 0.0
          %607 = vmatprep.subr.mxu0 0.0
          %608 = vmatpush1.msra.mxu0 0.0
          %609 = vmatprep.subr.mxu0 0.0
          %610 = vmatpush1.msra.mxu0 0.0
          %611 = vmatprep.subr.mxu0 0.0
          %612 = vmatpush1.msra.mxu0 0.0
          %613 = vmatprep.subr.mxu0 0.0
          %614 = vmatpush1.msra.mxu0 0.0
          %615 = vmatprep.subr.mxu0 0.0
          %616 = vmatpush1.msra.mxu0 0.0
          %617 = vmatprep.subr.mxu0 0.0
          %618 = vmatpush1.msra.mxu0 0.0
          %619 = vmatprep.subr.mxu0 0.0
          %620 = vmatpush1.msra.mxu0 0.0
          %621 = vmatprep.subr.mxu0 0.0
          %622 = vmatpush1.msra.mxu0 0.0
          %623 = vmatprep.subr.mxu0 0.0
          %624 = vmatpush1.msra.mxu0 0.0
          %625 = vmatprep.subr.mxu0 0.0
          %626 = vmatpush1.msra.mxu0 0.0
          %627 = vmatprep.subr.mxu0 0.0
          %628 = vmatpush1.msra.mxu0 0.0
          %629 = vmatprep.subr.mxu0 0.0
          %630 = vmatpush1.msra.mxu0 0.0
          %631 = vmatprep.subr.mxu0 0.0
          %632 = vmatpush1.msra.mxu0 0.0
          %633 = vmatprep.subr.mxu0 0.0
          %634 = vmatpush1.msra.mxu0 0.0
          %635 = vmatprep.subr.mxu0 0.0
          %636 = vmatpush1.msra.mxu0 0.0
          %637 = vmatprep.subr.mxu0 0.0
          %638 = vmatpush1.msra.mxu0 0.0
          %639 = vmatprep.subr.mxu0 0.0
          %640 = vmatpush1.msra.mxu0 0.0
          %641 = vmatprep.subr.mxu0 0.0
          %642 = vmatpush1.msra.mxu0 0.0
          %643 = vmatprep.subr.mxu0 0.0
          %644 = vmatpush1.msra.mxu0 0.0
          %645 = vmatprep.mubr.f32.mxu0 0.0
          %646 = vmatmul.mubr.f32.gmra.mrb[0].mxu0 %v579
          %v647 = vpop.f32.mrb[0].mxu0
          %v648 = vadd.f32 %v576, %v647
          %v649 = vpop.f32.mrb[0].mxu0
          %650 = vdwg.mxu0
          %651 = vst.msk [vmem:[#allocation3] sm:$0xff] %vm542, %v648
          %v653 = vlaneseq
          %v654 = vshrl.u32 %v653, 7
          %v655 = vsub.s32 0, %v654
          %v656 = vrot.slane %v540, %v655
          %658 = vmatprep.subr.mxu0 0.0
          %659 = vmatpush1.msra.mxu0 %v535
          %660 = vmatprep.subr.mxu0 0.0
          %661 = vmatpush1.msra.mxu0 %v536
          %662 = vmatprep.subr.mxu0 0.0
          %663 = vmatpush1.msra.mxu0 %v537
          %664 = vmatprep.subr.mxu0 0.0
          %665 = vmatpush1.msra.mxu0 %v538
          %666 = vmatprep.subr.mxu0 0.0
          %667 = vmatpush1.msra.mxu0 0.0
          %668 = vmatprep.subr.mxu0 0.0
          %669 = vmatpush1.msra.mxu0 0.0
          %670 = vmatprep.subr.mxu0 0.0
          %671 = vmatpush1.msra.mxu0 0.0
          %672 = vmatprep.subr.mxu0 0.0
          %673 = vmatpush1.msra.mxu0 0.0
          %674 = vmatprep.subr.mxu0 0.0
          %675 = vmatpush1.msra.mxu0 0.0
          %676 = vmatprep.subr.mxu0 0.0
          %677 = vmatpush1.msra.mxu0 0.0
          %678 = vmatprep.subr.mxu0 0.0
          %679 = vmatpush1.msra.mxu0 0.0
          %680 = vmatprep.subr.mxu0 0.0
          %681 = vmatpush1.msra.mxu0 0.0
          %682 = vmatprep.subr.mxu0 0.0
          %683 = vmatpush1.msra.mxu0 0.0
          %684 = vmatprep.subr.mxu0 0.0
          %685 = vmatpush1.msra.mxu0 0.0
          %686 = vmatprep.subr.mxu0 0.0
          %687 = vmatpush1.msra.mxu0 0.0
          %688 = vmatprep.subr.mxu0 0.0
          %689 = vmatpush1.msra.mxu0 0.0
          %690 = vmatprep.subr.mxu0 0.0
          %691 = vmatpush1.msra.mxu0 0.0
          %692 = vmatprep.subr.mxu0 0.0
          %693 = vmatpush1.msra.mxu0 0.0
          %694 = vmatprep.subr.mxu0 0.0
          %695 = vmatpush1.msra.mxu0 0.0
          %696 = vmatprep.subr.mxu0 0.0
          %697 = vmatpush1.msra.mxu0 0.0
          %698 = vmatprep.subr.mxu0 0.0
          %699 = vmatpush1.msra.mxu0 0.0
          %700 = vmatprep.subr.mxu0 0.0
          %701 = vmatpush1.msra.mxu0 0.0
          %702 = vmatprep.subr.mxu0 0.0
          %703 = vmatpush1.msra.mxu0 0.0
          %704 = vmatprep.subr.mxu0 0.0
          %705 = vmatpush1.msra.mxu0 0.0
          %706 = vmatprep.subr.mxu0 0.0
          %707 = vmatpush1.msra.mxu0 0.0
          %708 = vmatprep.subr.mxu0 0.0
          %709 = vmatpush1.msra.mxu0 0.0
          %710 = vmatprep.subr.mxu0 0.0
          %711 = vmatpush1.msra.mxu0 0.0
          %712 = vmatprep.subr.mxu0 0.0
          %713 = vmatpush1.msra.mxu0 0.0
          %714 = vmatprep.subr.mxu0 0.0
          %715 = vmatpush1.msra.mxu0 0.0
          %716 = vmatprep.subr.mxu0 0.0
          %717 = vmatpush1.msra.mxu0 0.0
          %718 = vmatprep.subr.mxu0 0.0
          %719 = vmatpush1.msra.mxu0 0.0
          %720 = vmatprep.subr.mxu0 0.0
          %721 = vmatpush1.msra.mxu0 0.0
          %722 = vmatprep.mubr.f32.mxu0 0.0
          %723 = vmatmul.mubr.f32.gmra.mrb[0].mxu0 %v579
          %v724 = vpop.f32.mrb[0].mxu0
          %v725 = vadd.f32 %v656, %v724
          %v726 = vpop.f32.mrb[0].mxu0
          %727 = vdwg.mxu0
          %728 = vst.msk [vmem:[#allocation4] sm:$0xff] %vm542, %v725
        $region88: #{tpu_custom_call.1} parent=79 // pred_fallthru
          _
        %s729 = scalar_lea.vmem %s477, %s524 [#allocation8]
        %v730 = vld [vmem:[%s729] sm:$0xff]
        %s731 = scalar_lea.vmem [#allocation2], %s524
        %v732 = vld [vmem:[%s731] sm:$0xff]
        %v733 = vld [vmem:[%s1] sm:$0xff]
        %v734 = vld [vmem:[%s1 + $0x8] sm:$0xff]
        %v735 = vld [vmem:[%s1 + $0x10] sm:$0xff]
        %v736 = vld [vmem:[%s1 + $0x18] sm:$0xff]
        %v737 = vld [vmem:[%s2] sm:$0x1]
        %v739 = vlaneseq
        %v740 = vshrl.u32 %v739, 7
        %v741 = vsub.s32 0, %v740
        %v742 = vrot.slane %v737, %v741
        %vm744 = vcmask 261120
        %v746 = vsel %vm744, %v732, 0
        %748 = vmatprep.subr.mxu0 0.0
        %749 = vmatpush1.msra.mxu0 %v733
        %750 = vmatprep.subr.mxu0 0.0
        %751 = vmatpush1.msra.mxu0 %v734
        %752 = vmatprep.subr.mxu0 0.0
        %753 = vmatpush1.msra.mxu0 %v735
        %754 = vmatprep.subr.mxu0 0.0
        %755 = vmatpush1.msra.mxu0 %v736
        %756 = vmatprep.subr.mxu0 0.0
        %757 = vmatpush1.msra.mxu0 0.0
        %758 = vmatprep.subr.mxu0 0.0
        %759 = vmatpush1.msra.mxu0 0.0
        %760 = vmatprep.subr.mxu0 0.0
        %761 = vmatpush1.msra.mxu0 0.0
        %762 = vmatprep.subr.mxu0 0.0
        %763 = vmatpush1.msra.mxu0 0.0
        %764 = vmatprep.subr.mxu0 0.0
        %765 = vmatpush1.msra.mxu0 0.0
        %766 = vmatprep.subr.mxu0 0.0
        %767 = vmatpush1.msra.mxu0 0.0
        %768 = vmatprep.subr.mxu0 0.0
        %769 = vmatpush1.msra.mxu0 0.0
        %770 = vmatprep.subr.mxu0 0.0
        %771 = vmatpush1.msra.mxu0 0.0
        %772 = vmatprep.subr.mxu0 0.0
        %773 = vmatpush1.msra.mxu0 0.0
        %774 = vmatprep.subr.mxu0 0.0
        %775 = vmatpush1.msra.mxu0 0.0
        %776 = vmatprep.subr.mxu0 0.0
        %777 = vmatpush1.msra.mxu0 0.0
        %778 = vmatprep.subr.mxu0 0.0
        %779 = vmatpush1.msra.mxu0 0.0
        %780 = vmatprep.subr.mxu0 0.0
        %781 = vmatpush1.msra.mxu0 0.0
        %782 = vmatprep.subr.mxu0 0.0
        %783 = vmatpush1.msra.mxu0 0.0
        %784 = vmatprep.subr.mxu0 0.0
        %785 = vmatpush1.msra.mxu0 0.0
        %786 = vmatprep.subr.mxu0 0.0
        %787 = vmatpush1.msra.mxu0 0.0
        %788 = vmatprep.subr.mxu0 0.0
        %789 = vmatpush1.msra.mxu0 0.0
        %790 = vmatprep.subr.mxu0 0.0
        %791 = vmatpush1.msra.mxu0 0.0
        %792 = vmatprep.subr.mxu0 0.0
        %793 = vmatpush1.msra.mxu0 0.0
        %794 = vmatprep.subr.mxu0 0.0
        %795 = vmatpush1.msra.mxu0 0.0
        %796 = vmatprep.subr.mxu0 0.0
        %797 = vmatpush1.msra.mxu0 0.0
        %798 = vmatprep.subr.mxu0 0.0
        %799 = vmatpush1.msra.mxu0 0.0
        %800 = vmatprep.subr.mxu0 0.0
        %801 = vmatpush1.msra.mxu0 0.0
        %802 = vmatprep.subr.mxu0 0.0
        %803 = vmatpush1.msra.mxu0 0.0
        %804 = vmatprep.subr.mxu0 0.0
        %805 = vmatpush1.msra.mxu0 0.0
        %806 = vmatprep.subr.mxu0 0.0
        %807 = vmatpush1.msra.mxu0 0.0
        %808 = vmatprep.subr.mxu0 0.0
        %809 = vmatpush1.msra.mxu0 0.0
        %810 = vmatprep.subr.mxu0 0.0
        %811 = vmatpush1.msra.mxu0 0.0
        %812 = vmatprep.mubr.f32.mxu0 0.0
        %813 = vmatmul.mubr.f32.gmra.mrb[0].mxu0 %v746
        %v814 = vpop.f32.mrb[0].mxu0
        %v815 = vadd.f32 %v742, %v814
        %v816 = vpop.f32.mrb[0].mxu0
        %817 = vdwg.mxu0
        %vm818 = vcmask 7168
        %819 = vst.msk [vmem:[#allocation5] sm:$0xff] %vm818, -inf
        %820 = vst.msk [vmem:[#allocation5 + $0x8] sm:$0xff] %vm818, -inf
        %821 = vst.msk [vmem:[#allocation5 + $0x10] sm:$0xff] %vm818, -inf
        %822 = vst.msk [vmem:[#allocation5 + $0x18] sm:$0xff] %vm818, -inf
        %823 = vst.msk [vmem:[#allocation6] sm:$0xff] %vm818, 0.0
        %824 = vst.msk [vmem:[#allocation6 + $0x8] sm:$0xff] %vm818, 0.0
        %825 = vst.msk [vmem:[#allocation6 + $0x10] sm:$0xff] %vm818, 0.0
        %826 = vst.msk [vmem:[#allocation6 + $0x18] sm:$0xff] %vm818, 0.0
        %vm827 = vcmask 64512
        %828 = vst.msk [vmem:[#allocation7] sm:$0xff] %vm827, 0.0
        %829 = vst.msk [vmem:[#allocation7 + $0x8] sm:$0xff] %vm827, 0.0
        %830 = vst.msk [vmem:[#allocation7 + $0x10] sm:$0xff] %vm827, 0.0
        %831 = vst.msk [vmem:[#allocation7 + $0x18] sm:$0xff] %vm827, 0.0
        %v832 = vlaneseq
        %v833 = vshrl.u32 %v832, 7
        %v834 = vstv %s524
        %v835 = vadd.s32 %v834, %v833
        %v836 = vlaneseq
        %v837 = vand.u32 %v836, 127
        %s838 = sadd.s32 %s37, 1
        // While loop
        $region89: #{tpu_custom_call.1} parent=79 // loop_pre_header
          _
        $region90: #{tpu_custom_call.1} parent=79 // loop_header
          %s840 = sphi 0, %s842
          %p841 = scmp.ge.s32.totalorder %s840, %s838
        $region91: #{tpu_custom_call.1} parent=79 // loop_header_branch
          %844 = sbr.rel (%p841) target = $region95
        $region92: #{tpu_custom_call.1} parent=79 // loop_body
          %s845 = smul.u32 %s840, 8
          %s846 = scalar_lea.vmem [#allocation3], %s845
          %v847 = vld [vmem:[%s846] sm:$0xff]
          %s848 = scalar_lea.vmem [#allocation4], %s845
          %v849 = vld [vmem:[%s848] sm:$0xff]
          %v850 = vstv %s845
          %v851 = vadd.s32 %v850, %v837
          %vm852 = vcmp.le.s32.totalorder %v851, %v835
          %v854 = vsel %vm827, %v815, 0
          %v857 = vsel %vm827, %v847, 0
          %859 = vmatprep.subr.mxu0 0.0
          %860 = vmatpush1.xpose.msra.mxu0 %v857
          %861 = vmatprep.subr.mxu0 0.0
          %862 = vmatpush1.xpose.msra.mxu0 0.0
          %863 = vmatprep.subr.mxu0 0.0
          %864 = vmatpush1.xpose.msra.mxu0 0.0
          %865 = vmatprep.subr.mxu0 0.0
          %866 = vmatpush1.xpose.msra.mxu0 0.0
          %867 = vmatprep.subr.mxu0 0.0
          %868 = vmatpush1.xpose.msra.mxu0 0.0
          %869 = vmatprep.subr.mxu0 0.0
          %870 = vmatpush1.xpose.msra.mxu0 0.0
          %871 = vmatprep.subr.mxu0 0.0
          %872 = vmatpush1.xpose.msra.mxu0 0.0
          %873 = vmatprep.subr.mxu0 0.0
          %874 = vmatpush1.xpose.msra.mxu0 0.0
          %875 = vmatprep.subr.mxu0 0.0
          %876 = vmatpush1.xpose.msra.mxu0 0.0
          %877 = vmatprep.subr.mxu0 0.0
          %878 = vmatpush1.xpose.msra.mxu0 0.0
          %879 = vmatprep.subr.mxu0 0.0
          %880 = vmatpush1.xpose.msra.mxu0 0.0
          %881 = vmatprep.subr.mxu0 0.0
          %882 = vmatpush1.xpose.msra.mxu0 0.0
          %883 = vmatprep.subr.mxu0 0.0
          %884 = vmatpush1.xpose.msra.mxu0 0.0
          %885 = vmatprep.subr.mxu0 0.0
          %886 = vmatpush1.xpose.msra.mxu0 0.0
          %887 = vmatprep.subr.mxu0 0.0
          %888 = vmatpush1.xpose.msra.mxu0 0.0
          %889 = vmatprep.subr.mxu0 0.0
          %890 = vmatpush1.xpose.msra.mxu0 0.0
          %891 = vmatprep.subr.mxu0 0.0
          %892 = vmatpush1.xpose.msra.mxu0 0.0
          %893 = vmatprep.subr.mxu0 0.0
          %894 = vmatpush1.xpose.msra.mxu0 0.0
          %895 = vmatprep.subr.mxu0 0.0
          %896 = vmatpush1.xpose.msra.mxu0 0.0
          %897 = vmatprep.subr.mxu0 0.0
          %898 = vmatpush1.xpose.msra.mxu0 0.0
          %899 = vmatprep.subr.mxu0 0.0
          %900 = vmatpush1.xpose.msra.mxu0 0.0
          %901 = vmatprep.subr.mxu0 0.0
          %902 = vmatpush1.xpose.msra.mxu0 0.0
          %903 = vmatprep.subr.mxu0 0.0
          %904 = vmatpush1.xpose.msra.mxu0 0.0
          %905 = vmatprep.subr.mxu0 0.0
          %906 = vmatpush1.xpose.msra.mxu0 0.0
          %907 = vmatprep.subr.mxu0 0.0
          %908 = vmatpush1.xpose.msra.mxu0 0.0
          %909 = vmatprep.subr.mxu0 0.0
          %910 = vmatpush1.xpose.msra.mxu0 0.0
          %911 = vmatprep.subr.mxu0 0.0
          %912 = vmatpush1.xpose.msra.mxu0 0.0
          %913 = vmatprep.subr.mxu0 0.0
          %914 = vmatpush1.xpose.msra.mxu0 0.0
          %915 = vmatprep.subr.mxu0 0.0
          %916 = vmatpush1.xpose.msra.mxu0 0.0
          %917 = vmatprep.subr.mxu0 0.0
          %918 = vmatpush1.xpose.msra.mxu0 0.0
          %919 = vmatprep.subr.mxu0 0.0
          %920 = vmatpush1.xpose.msra.mxu0 0.0
          %921 = vmatprep.subr.mxu0 0.0
          %922 = vmatpush1.xpose.msra.mxu0 0.0
          %923 = vmatprep.mubr.f32.mxu0 0.0
          %924 = vmatmul.mubr.f32.gmra.mrb[0].mxu0 %v854
          %v925 = vpop.f32.mrb[0].mxu0
          %v926 = vadd.f32 0.0, %v925
          %v927 = vpop.f32.mrb[0].mxu0
          %928 = vdwg.mxu0
          %v929 = vsel %vm852, %v926, -1e+30
          %v930 = vld [vmem:[#allocation5] sm:$0xff]
          %v931 = vsel %vm827, %v929, -inf
          %932 = vmax.xlane.f32.xlu0 %v931
          %v933 = vpop.xlane.xlu0 %932
          %v934 = vmax.f32 %v930, %v933
          %v935 = vsub.f32 %v930, %v934
          %v936 = vmul.f32 %v935, 1.442695
          %v937 = vpow.pop %v936
          %939 = vset.pattern.permute.xlu0 0
          %940 = vperm.xlu0 %939, %v934
          %v941 = vpop.permute.xlu0 %940
          %v943 = vsub.f32 %v929, %v941
          %v944 = vmul.f32 %v943, 1.442695
          %v945 = vpow.pop %v944
          %v946 = vld [vmem:[#allocation6] sm:$0xff]
          %v947 = vmul.f32 %v937, %v946
          %v948 = vsel %vm827, %v945, 0.0
          %949 = vadd.xlane.f32.xlu0 %v948
          %v950 = vpop.xlane.xlu0 %949
          %v951 = vadd.f32 %v947, %v950
          %952 = vst.msk [vmem:[#allocation6] sm:$0xff] %vm818, %v951
          %v953 = vld [vmem:[#allocation7] sm:$0xff]
          %955 = vset.pattern.permute.xlu0 0
          %956 = vperm.xlu0 %955, %v937
          %v957 = vpop.permute.xlu0 %956
          %v959 = vmul.f32 %v957, %v953
          %v961 = vsel %vm827, %v945, 0
          %963 = vmatprep.subr.mxu0 0.0
          %964 = vmatpush1.msra.mxu0 %v849
          %965 = vmatprep.subr.mxu0 0.0
          %966 = vmatpush1.msra.mxu0 0.0
          %967 = vmatprep.subr.mxu0 0.0
          %968 = vmatpush1.msra.mxu0 0.0
          %969 = vmatprep.subr.mxu0 0.0
          %970 = vmatpush1.msra.mxu0 0.0
          %971 = vmatprep.subr.mxu0 0.0
          %972 = vmatpush1.msra.mxu0 0.0
          %973 = vmatprep.subr.mxu0 0.0
          %974 = vmatpush1.msra.mxu0 0.0
          %975 = vmatprep.subr.mxu0 0.0
          %976 = vmatpush1.msra.mxu0 0.0
          %977 = vmatprep.subr.mxu0 0.0
          %978 = vmatpush1.msra.mxu0 0.0
          %979 = vmatprep.subr.mxu0 0.0
          %980 = vmatpush1.msra.mxu0 0.0
          %981 = vmatprep.subr.mxu0 0.0
          %982 = vmatpush1.msra.mxu0 0.0
          %983 = vmatprep.subr.mxu0 0.0
          %984 = vmatpush1.msra.mxu0 0.0
          %985 = vmatprep.subr.mxu0 0.0
          %986 = vmatpush1.msra.mxu0 0.0
          %987 = vmatprep.subr.mxu0 0.0
          %988 = vmatpush1.msra.mxu0 0.0
          %989 = vmatprep.subr.mxu0 0.0
          %990 = vmatpush1.msra.mxu0 0.0
          %991 = vmatprep.subr.mxu0 0.0
          %992 = vmatpush1.msra.mxu0 0.0
          %993 = vmatprep.subr.mxu0 0.0
          %994 = vmatpush1.msra.mxu0 0.0
          %995 = vmatprep.subr.mxu0 0.0
          %996 = vmatpush1.msra.mxu0 0.0
          %997 = vmatprep.subr.mxu0 0.0
          %998 = vmatpush1.msra.mxu0 0.0
          %999 = vmatprep.subr.mxu0 0.0
          %1000 = vmatpush1.msra.mxu0 0.0
          %1001 = vmatprep.subr.mxu0 0.0
          %1002 = vmatpush1.msra.mxu0 0.0
          %1003 = vmatprep.subr.mxu0 0.0
          %1004 = vmatpush1.msra.mxu0 0.0
          %1005 = vmatprep.subr.mxu0 0.0
          %1006 = vmatpush1.msra.mxu0 0.0
          %1007 = vmatprep.subr.mxu0 0.0
          %1008 = vmatpush1.msra.mxu0 0.0
          %1009 = vmatprep.subr.mxu0 0.0
          %1010 = vmatpush1.msra.mxu0 0.0
          %1011 = vmatprep.subr.mxu0 0.0
          %1012 = vmatpush1.msra.mxu0 0.0
          %1013 = vmatprep.subr.mxu0 0.0
          %1014 = vmatpush1.msra.mxu0 0.0
          %1015 = vmatprep.subr.mxu0 0.0
          %1016 = vmatpush1.msra.mxu0 0.0
          %1017 = vmatprep.subr.mxu0 0.0
          %1018 = vmatpush1.msra.mxu0 0.0
          %1019 = vmatprep.subr.mxu0 0.0
          %1020 = vmatpush1.msra.mxu0 0.0
          %1021 = vmatprep.subr.mxu0 0.0
          %1022 = vmatpush1.msra.mxu0 0.0
          %1023 = vmatprep.subr.mxu0 0.0
          %1024 = vmatpush1.msra.mxu0 0.0
          %1025 = vmatprep.subr.mxu0 0.0
          %1026 = vmatpush1.msra.mxu0 0.0
          %1027 = vmatprep.mubr.f32.mxu0 0.0
          %1028 = vmatmul.mubr.f32.gmra.mrb[0].mxu0 %v961
          %v1029 = vpop.f32.mrb[0].mxu0
          %v1030 = vadd.f32 0.0, %v1029
          %v1031 = vpop.f32.mrb[0].mxu0
          %1032 = vdwg.mxu0
          %v1033 = vadd.f32 %v959, %v1030
          %1034 = vst.msk [vmem:[#allocation7] sm:$0xff] %vm827, %v1033
          %1035 = vst.msk [vmem:[#allocation5] sm:$0xff] %vm818, %v934
          %1036 = vrot.lane.b32.xlu0 %v815, 120
          %v1037 = vpop.permute.xlu0 %1036
          %1038 = vrot.lane.b32.xlu0 %v847, 120
          %v1039 = vpop.permute.xlu0 %1038
          %v1040 = vsel %vm827, %v1037, 0
          %v1042 = vsel %vm827, %v1039, 0
          %1044 = vmatprep.subr.mxu0 0.0
          %1045 = vmatpush1.xpose.msra.mxu0 %v1042
          %1046 = vmatprep.subr.mxu0 0.0
          %1047 = vmatpush1.xpose.msra.mxu0 0.0
          %1048 = vmatprep.subr.mxu0 0.0
          %1049 = vmatpush1.xpose.msra.mxu0 0.0
          %1050 = vmatprep.subr.mxu0 0.0
          %1051 = vmatpush1.xpose.msra.mxu0 0.0
          %1052 = vmatprep.subr.mxu0 0.0
          %1053 = vmatpush1.xpose.msra.mxu0 0.0
          %1054 = vmatprep.subr.mxu0 0.0
          %1055 = vmatpush1.xpose.msra.mxu0 0.0
          %1056 = vmatprep.subr.mxu0 0.0
          %1057 = vmatpush1.xpose.msra.mxu0 0.0
          %1058 = vmatprep.subr.mxu0 0.0
          %1059 = vmatpush1.xpose.msra.mxu0 0.0
          %1060 = vmatprep.subr.mxu0 0.0
          %1061 = vmatpush1.xpose.msra.mxu0 0.0
          %1062 = vmatprep.subr.mxu0 0.0
          %1063 = vmatpush1.xpose.msra.mxu0 0.0
          %1064 = vmatprep.subr.mxu0 0.0
          %1065 = vmatpush1.xpose.msra.mxu0 0.0
          %1066 = vmatprep.subr.mxu0 0.0
          %1067 = vmatpush1.xpose.msra.mxu0 0.0
          %1068 = vmatprep.subr.mxu0 0.0
          %1069 = vmatpush1.xpose.msra.mxu0 0.0
          %1070 = vmatprep.subr.mxu0 0.0
          %1071 = vmatpush1.xpose.msra.mxu0 0.0
          %1072 = vmatprep.subr.mxu0 0.0
          %1073 = vmatpush1.xpose.msra.mxu0 0.0
          %1074 = vmatprep.subr.mxu0 0.0
          %1075 = vmatpush1.xpose.msra.mxu0 0.0
          %1076 = vmatprep.subr.mxu0 0.0
          %1077 = vmatpush1.xpose.msra.mxu0 0.0
          %1078 = vmatprep.subr.mxu0 0.0
          %1079 = vmatpush1.xpose.msra.mxu0 0.0
          %1080 = vmatprep.subr.mxu0 0.0
          %1081 = vmatpush1.xpose.msra.mxu0 0.0
          %1082 = vmatprep.subr.mxu0 0.0
          %1083 = vmatpush1.xpose.msra.mxu0 0.0
          %1084 = vmatprep.subr.mxu0 0.0
          %1085 = vmatpush1.xpose.msra.mxu0 0.0
          %1086 = vmatprep.subr.mxu0 0.0
          %1087 = vmatpush1.xpose.msra.mxu0 0.0
          %1088 = vmatprep.subr.mxu0 0.0
          %1089 = vmatpush1.xpose.msra.mxu0 0.0
          %1090 = vmatprep.subr.mxu0 0.0
          %1091 = vmatpush1.xpose.msra.mxu0 0.0
          %1092 = vmatprep.subr.mxu0 0.0
          %1093 = vmatpush1.xpose.msra.mxu0 0.0
          %1094 = vmatprep.subr.mxu0 0.0
          %1095 = vmatpush1.xpose.msra.mxu0 0.0
          %1096 = vmatprep.subr.mxu0 0.0
          %1097 = vmatpush1.xpose.msra.mxu0 0.0
          %1098 = vmatprep.subr.mxu0 0.0
          %1099 = vmatpush1.xpose.msra.mxu0 0.0
          %1100 = vmatprep.subr.mxu0 0.0
          %1101 = vmatpush1.xpose.msra.mxu0 0.0
          %1102 = vmatprep.subr.mxu0 0.0
          %1103 = vmatpush1.xpose.msra.mxu0 0.0
          %1104 = vmatprep.subr.mxu0 0.0
          %1105 = vmatpush1.xpose.msra.mxu0 0.0
          %1106 = vmatprep.subr.mxu0 0.0
          %1107 = vmatpush1.xpose.msra.mxu0 0.0
          %1108 = vmatprep.mubr.f32.mxu0 0.0
          %1109 = vmatmul.mubr.f32.gmra.mrb[0].mxu0 %v1040
          %v1110 = vpop.f32.mrb[0].mxu0
          %v1111 = vadd.f32 0.0, %v1110
          %v1112 = vpop.f32.mrb[0].mxu0
          %1113 = vdwg.mxu0
          %v1114 = vsel %vm852, %v1111, -1e+30
          %s1115 = scalar_lea.vmem [#allocation5], 8
          %v1116 = vld [vmem:[%s1115] sm:$0xff]
          %v1117 = vsel %vm827, %v1114, -inf
          %1118 = vmax.xlane.f32.xlu0 %v1117
          %v1119 = vpop.xlane.xlu0 %1118
          %v1120 = vmax.f32 %v1116, %v1119
          %v1121 = vsub.f32 %v1116, %v1120
          %v1122 = vmul.f32 %v1121, 1.442695
          %v1123 = vpow.pop %v1122
          %1125 = vset.pattern.permute.xlu0 0
          %1126 = vperm.xlu0 %1125, %v1120
          %v1127 = vpop.permute.xlu0 %1126
          %v1129 = vsub.f32 %v1114, %v1127
          %v1130 = vmul.f32 %v1129, 1.442695
          %v1131 = vpow.pop %v1130
          %s1132 = scalar_lea.vmem [#allocation6], 8
          %v1133 = vld [vmem:[%s1132] sm:$0xff]
          %v1134 = vmul.f32 %v1123, %v1133
          %v1135 = vsel %vm827, %v1131, 0.0
          %1136 = vadd.xlane.f32.xlu0 %v1135
          %v1137 = vpop.xlane.xlu0 %1136
          %v1138 = vadd.f32 %v1134, %v1137
          %1139 = vst.msk [vmem:[%s1132] sm:$0xff] %vm818, %v1138
          %s1140 = scalar_lea.vmem [#allocation7], 8
          %v1141 = vld [vmem:[%s1140] sm:$0xff]
          %1143 = vset.pattern.permute.xlu0 0
          %1144 = vperm.xlu0 %1143, %v1123
          %v1145 = vpop.permute.xlu0 %1144
          %v1147 = vmul.f32 %v1145, %v1141
          %1149 = vrot.lane.b32.xlu0 %v849, 120
          %v1150 = vpop.permute.xlu0 %1149
          %v1153 = vsel %vm827, %v1131, 0
          %1155 = vmatprep.subr.mxu0 0.0
          %1156 = vmatpush1.msra.mxu0 %v1150
          %1157 = vmatprep.subr.mxu0 0.0
          %1158 = vmatpush1.msra.mxu0 0.0
          %1159 = vmatprep.subr.mxu0 0.0
          %1160 = vmatpush1.msra.mxu0 0.0
          %1161 = vmatprep.subr.mxu0 0.0
          %1162 = vmatpush1.msra.mxu0 0.0
          %1163 = vmatprep.subr.mxu0 0.0
          %1164 = vmatpush1.msra.mxu0 0.0
          %1165 = vmatprep.subr.mxu0 0.0
          %1166 = vmatpush1.msra.mxu0 0.0
          %1167 = vmatprep.subr.mxu0 0.0
          %1168 = vmatpush1.msra.mxu0 0.0
          %1169 = vmatprep.subr.mxu0 0.0
          %1170 = vmatpush1.msra.mxu0 0.0
          %1171 = vmatprep.subr.mxu0 0.0
          %1172 = vmatpush1.msra.mxu0 0.0
          %1173 = vmatprep.subr.mxu0 0.0
          %1174 = vmatpush1.msra.mxu0 0.0
          %1175 = vmatprep.subr.mxu0 0.0
          %1176 = vmatpush1.msra.mxu0 0.0
          %1177 = vmatprep.subr.mxu0 0.0
          %1178 = vmatpush1.msra.mxu0 0.0
          %1179 = vmatprep.subr.mxu0 0.0
          %1180 = vmatpush1.msra.mxu0 0.0
          %1181 = vmatprep.subr.mxu0 0.0
          %1182 = vmatpush1.msra.mxu0 0.0
          %1183 = vmatprep.subr.mxu0 0.0
          %1184 = vmatpush1.msra.mxu0 0.0
          %1185 = vmatprep.subr.mxu0 0.0
          %1186 = vmatpush1.msra.mxu0 0.0
          %1187 = vmatprep.subr.mxu0 0.0
          %1188 = vmatpush1.msra.mxu0 0.0
          %1189 = vmatprep.subr.mxu0 0.0
          %1190 = vmatpush1.msra.mxu0 0.0
          %1191 = vmatprep.subr.mxu0 0.0
          %1192 = vmatpush1.msra.mxu0 0.0
          %1193 = vmatprep.subr.mxu0 0.0
          %1194 = vmatpush1.msra.mxu0 0.0
          %1195 = vmatprep.subr.mxu0 0.0
          %1196 = vmatpush1.msra.mxu0 0.0
          %1197 = vmatprep.subr.mxu0 0.0
          %1198 = vmatpush1.msra.mxu0 0.0
          %1199 = vmatprep.subr.mxu0 0.0
          %1200 = vmatpush1.msra.mxu0 0.0
          %1201 = vmatprep.subr.mxu0 0.0
          %1202 = vmatpush1.msra.mxu0 0.0
          %1203 = vmatprep.subr.mxu0 0.0
          %1204 = vmatpush1.msra.mxu0 0.0
          %1205 = vmatprep.subr.mxu0 0.0
          %1206 = vmatpush1.msra.mxu0 0.0
          %1207 = vmatprep.subr.mxu0 0.0
          %1208 = vmatpush1.msra.mxu0 0.0
          %1209 = vmatprep.subr.mxu0 0.0
          %1210 = vmatpush1.msra.mxu0 0.0
          %1211 = vmatprep.subr.mxu0 0.0
          %1212 = vmatpush1.msra.mxu0 0.0
          %1213 = vmatprep.subr.mxu0 0.0
          %1214 = vmatpush1.msra.mxu0 0.0
          %1215 = vmatprep.subr.mxu0 0.0
          %1216 = vmatpush1.msra.mxu0 0.0
          %1217 = vmatprep.subr.mxu0 0.0
          %1218 = vmatpush1.msra.mxu0 0.0
          %1219 = vmatprep.mubr.f32.mxu0 0.0
          %1220 = vmatmul.mubr.f32.gmra.mrb[0].mxu0 %v1153
          %v1221 = vpop.f32.mrb[0].mxu0
          %v1222 = vadd.f32 0.0, %v1221
          %v1223 = vpop.f32.mrb[0].mxu0
          %1224 = vdwg.mxu0
          %v1225 = vadd.f32 %v1147, %v1222
          %1226 = vst.msk [vmem:[%s1140] sm:$0xff] %vm827, %v1225
          %1227 = vst.msk [vmem:[%s1115] sm:$0xff] %vm818, %v1120
          %1228 = vrot.lane.b32.xlu0 %v815, 112
          %v1229 = vpop.permute.xlu0 %1228
          %1230 = vrot.lane.b32.xlu0 %v847, 112
          %v1231 = vpop.permute.xlu0 %1230
          %v1232 = vsel %vm827, %v1229, 0
          %v1234 = vsel %vm827, %v1231, 0
          %1236 = vmatprep.subr.mxu0 0.0
          %1237 = vmatpush1.xpose.msra.mxu0 %v1234
          %1238 = vmatprep.subr.mxu0 0.0
          %1239 = vmatpush1.xpose.msra.mxu0 0.0
          %1240 = vmatprep.subr.mxu0 0.0
          %1241 = vmatpush1.xpose.msra.mxu0 0.0
          %1242 = vmatprep.subr.mxu0 0.0
          %1243 = vmatpush1.xpose.msra.mxu0 0.0
          %1244 = vmatprep.subr.mxu0 0.0
          %1245 = vmatpush1.xpose.msra.mxu0 0.0
          %1246 = vmatprep.subr.mxu0 0.0
          %1247 = vmatpush1.xpose.msra.mxu0 0.0
          %1248 = vmatprep.subr.mxu0 0.0
          %1249 = vmatpush1.xpose.msra.mxu0 0.0
          %1250 = vmatprep.subr.mxu0 0.0
          %1251 = vmatpush1.xpose.msra.mxu0 0.0
          %1252 = vmatprep.subr.mxu0 0.0
          %1253 = vmatpush1.xpose.msra.mxu0 0.0
          %1254 = vmatprep.subr.mxu0 0.0
          %1255 = vmatpush1.xpose.msra.mxu0 0.0
          %1256 = vmatprep.subr.mxu0 0.0
          %1257 = vmatpush1.xpose.msra.mxu0 0.0
          %1258 = vmatprep.subr.mxu0 0.0
          %1259 = vmatpush1.xpose.msra.mxu0 0.0
          %1260 = vmatprep.subr.mxu0 0.0
          %1261 = vmatpush1.xpose.msra.mxu0 0.0
          %1262 = vmatprep.subr.mxu0 0.0
          %1263 = vmatpush1.xpose.msra.mxu0 0.0
          %1264 = vmatprep.subr.mxu0 0.0
          %1265 = vmatpush1.xpose.msra.mxu0 0.0
          %1266 = vmatprep.subr.mxu0 0.0
          %1267 = vmatpush1.xpose.msra.mxu0 0.0
          %1268 = vmatprep.subr.mxu0 0.0
          %1269 = vmatpush1.xpose.msra.mxu0 0.0
          %1270 = vmatprep.subr.mxu0 0.0
          %1271 = vmatpush1.xpose.msra.mxu0 0.0
          %1272 = vmatprep.subr.mxu0 0.0
          %1273 = vmatpush1.xpose.msra.mxu0 0.0
          %1274 = vmatprep.subr.mxu0 0.0
          %1275 = vmatpush1.xpose.msra.mxu0 0.0
          %1276 = vmatprep.subr.mxu0 0.0
          %1277 = vmatpush1.xpose.msra.mxu0 0.0
          %1278 = vmatprep.subr.mxu0 0.0
          %1279 = vmatpush1.xpose.msra.mxu0 0.0
          %1280 = vmatprep.subr.mxu0 0.0
          %1281 = vmatpush1.xpose.msra.mxu0 0.0
          %1282 = vmatprep.subr.mxu0 0.0
          %1283 = vmatpush1.xpose.msra.mxu0 0.0
          %1284 = vmatprep.subr.mxu0 0.0
          %1285 = vmatpush1.xpose.msra.mxu0 0.0
          %1286 = vmatprep.subr.mxu0 0.0
          %1287 = vmatpush1.xpose.msra.mxu0 0.0
          %1288 = vmatprep.subr.mxu0 0.0
          %1289 = vmatpush1.xpose.msra.mxu0 0.0
          %1290 = vmatprep.subr.mxu0 0.0
          %1291 = vmatpush1.xpose.msra.mxu0 0.0
          %1292 = vmatprep.subr.mxu0 0.0
          %1293 = vmatpush1.xpose.msra.mxu0 0.0
          %1294 = vmatprep.subr.mxu0 0.0
          %1295 = vmatpush1.xpose.msra.mxu0 0.0
          %1296 = vmatprep.subr.mxu0 0.0
          %1297 = vmatpush1.xpose.msra.mxu0 0.0
          %1298 = vmatprep.subr.mxu0 0.0
          %1299 = vmatpush1.xpose.msra.mxu0 0.0
          %1300 = vmatprep.mubr.f32.mxu0 0.0
          %1301 = vmatmul.mubr.f32.gmra.mrb[0].mxu0 %v1232
          %v1302 = vpop.f32.mrb[0].mxu0
          %v1303 = vadd.f32 0.0, %v1302
          %v1304 = vpop.f32.mrb[0].mxu0
          %1305 = vdwg.mxu0
          %v1306 = vsel %vm852, %v1303, -1e+30
          %s1307 = scalar_lea.vmem [#allocation5], 16
          %v1308 = vld [vmem:[%s1307] sm:$0xff]
          %v1309 = vsel %vm827, %v1306, -inf
          %1310 = vmax.xlane.f32.xlu0 %v1309
          %v1311 = vpop.xlane.xlu0 %1310
          %v1312 = vmax.f32 %v1308, %v1311
          %v1313 = vsub.f32 %v1308, %v1312
          %v1314 = vmul.f32 %v1313, 1.442695
          %v1315 = vpow.pop %v1314
          %1317 = vset.pattern.permute.xlu0 0
          %1318 = vperm.xlu0 %1317, %v1312
          %v1319 = vpop.permute.xlu0 %1318
          %v1321 = vsub.f32 %v1306, %v1319
          %v1322 = vmul.f32 %v1321, 1.442695
          %v1323 = vpow.pop %v1322
          %s1324 = scalar_lea.vmem [#allocation6], 16
          %v1325 = vld [vmem:[%s1324] sm:$0xff]
          %v1326 = vmul.f32 %v1315, %v1325
          %v1327 = vsel %vm827, %v1323, 0.0
          %1328 = vadd.xlane.f32.xlu0 %v1327
          %v1329 = vpop.xlane.xlu0 %1328
          %v1330 = vadd.f32 %v1326, %v1329
          %1331 = vst.msk [vmem:[%s1324] sm:$0xff] %vm818, %v1330
          %s1332 = scalar_lea.vmem [#allocation7], 16
          %v1333 = vld [vmem:[%s1332] sm:$0xff]
          %1335 = vset.pattern.permute.xlu0 0
          %1336 = vperm.xlu0 %1335, %v1315
          %v1337 = vpop.permute.xlu0 %1336
          %v1339 = vmul.f32 %v1337, %v1333
          %1340 = vrot.lane.b32.xlu0 %v849, 112
          %v1341 = vpop.permute.xlu0 %1340
          %v1344 = vsel %vm827, %v1323, 0
          %1346 = vmatprep.subr.mxu0 0.0
          %1347 = vmatpush1.msra.mxu0 %v1341
          %1348 = vmatprep.subr.mxu0 0.0
          %1349 = vmatpush1.msra.mxu0 0.0
          %1350 = vmatprep.subr.mxu0 0.0
          %1351 = vmatpush1.msra.mxu0 0.0
          %1352 = vmatprep.subr.mxu0 0.0
          %1353 = vmatpush1.msra.mxu0 0.0
          %1354 = vmatprep.subr.mxu0 0.0
          %1355 = vmatpush1.msra.mxu0 0.0
          %1356 = vmatprep.subr.mxu0 0.0
          %1357 = vmatpush1.msra.mxu0 0.0
          %1358 = vmatprep.subr.mxu0 0.0
          %1359 = vmatpush1.msra.mxu0 0.0
          %1360 = vmatprep.subr.mxu0 0.0
          %1361 = vmatpush1.msra.mxu0 0.0
          %1362 = vmatprep.subr.mxu0 0.0
          %1363 = vmatpush1.msra.mxu0 0.0
          %1364 = vmatprep.subr.mxu0 0.0
          %1365 = vmatpush1.msra.mxu0 0.0
          %1366 = vmatprep.subr.mxu0 0.0
          %1367 = vmatpush1.msra.mxu0 0.0
          %1368 = vmatprep.subr.mxu0 0.0
          %1369 = vmatpush1.msra.mxu0 0.0
          %1370 = vmatprep.subr.mxu0 0.0
          %1371 = vmatpush1.msra.mxu0 0.0
          %1372 = vmatprep.subr.mxu0 0.0
          %1373 = vmatpush1.msra.mxu0 0.0
          %1374 = vmatprep.subr.mxu0 0.0
          %1375 = vmatpush1.msra.mxu0 0.0
          %1376 = vmatprep.subr.mxu0 0.0
          %1377 = vmatpush1.msra.mxu0 0.0
          %1378 = vmatprep.subr.mxu0 0.0
          %1379 = vmatpush1.msra.mxu0 0.0
          %1380 = vmatprep.subr.mxu0 0.0
          %1381 = vmatpush1.msra.mxu0 0.0
          %1382 = vmatprep.subr.mxu0 0.0
          %1383 = vmatpush1.msra.mxu0 0.0
          %1384 = vmatprep.subr.mxu0 0.0
          %1385 = vmatpush1.msra.mxu0 0.0
          %1386 = vmatprep.subr.mxu0 0.0
          %1387 = vmatpush1.msra.mxu0 0.0
          %1388 = vmatprep.subr.mxu0 0.0
          %1389 = vmatpush1.msra.mxu0 0.0
          %1390 = vmatprep.subr.mxu0 0.0
          %1391 = vmatpush1.msra.mxu0 0.0
          %1392 = vmatprep.subr.mxu0 0.0
          %1393 = vmatpush1.msra.mxu0 0.0
          %1394 = vmatprep.subr.mxu0 0.0
          %1395 = vmatpush1.msra.mxu0 0.0
          %1396 = vmatprep.subr.mxu0 0.0
          %1397 = vmatpush1.msra.mxu0 0.0
          %1398 = vmatprep.subr.mxu0 0.0
          %1399 = vmatpush1.msra.mxu0 0.0
          %1400 = vmatprep.subr.mxu0 0.0
          %1401 = vmatpush1.msra.mxu0 0.0
          %1402 = vmatprep.subr.mxu0 0.0
          %1403 = vmatpush1.msra.mxu0 0.0
          %1404 = vmatprep.subr.mxu0 0.0
          %1405 = vmatpush1.msra.mxu0 0.0
          %1406 = vmatprep.subr.mxu0 0.0
          %1407 = vmatpush1.msra.mxu0 0.0
          %1408 = vmatprep.subr.mxu0 0.0
          %1409 = vmatpush1.msra.mxu0 0.0
          %1410 = vmatprep.mubr.f32.mxu0 0.0
          %1411 = vmatmul.mubr.f32.gmra.mrb[0].mxu0 %v1344
          %v1412 = vpop.f32.mrb[0].mxu0
          %v1413 = vadd.f32 0.0, %v1412
          %v1414 = vpop.f32.mrb[0].mxu0
          %1415 = vdwg.mxu0
          %v1416 = vadd.f32 %v1339, %v1413
          %1417 = vst.msk [vmem:[%s1332] sm:$0xff] %vm827, %v1416
          %1418 = vst.msk [vmem:[%s1307] sm:$0xff] %vm818, %v1312
          %1419 = vrot.lane.b32.xlu0 %v815, 104
          %v1420 = vpop.permute.xlu0 %1419
          %1421 = vrot.lane.b32.xlu0 %v847, 104
          %v1422 = vpop.permute.xlu0 %1421
          %v1423 = vsel %vm827, %v1420, 0
          %v1425 = vsel %vm827, %v1422, 0
          %1427 = vmatprep.subr.mxu0 0.0
          %1428 = vmatpush1.xpose.msra.mxu0 %v1425
          %1429 = vmatprep.subr.mxu0 0.0
          %1430 = vmatpush1.xpose.msra.mxu0 0.0
          %1431 = vmatprep.subr.mxu0 0.0
          %1432 = vmatpush1.xpose.msra.mxu0 0.0
          %1433 = vmatprep.subr.mxu0 0.0
          %1434 = vmatpush1.xpose.msra.mxu0 0.0
          %1435 = vmatprep.subr.mxu0 0.0
          %1436 = vmatpush1.xpose.msra.mxu0 0.0
          %1437 = vmatprep.subr.mxu0 0.0
          %1438 = vmatpush1.xpose.msra.mxu0 0.0
          %1439 = vmatprep.subr.mxu0 0.0
          %1440 = vmatpush1.xpose.msra.mxu0 0.0
          %1441 = vmatprep.subr.mxu0 0.0
          %1442 = vmatpush1.xpose.msra.mxu0 0.0
          %1443 = vmatprep.subr.mxu0 0.0
          %1444 = vmatpush1.xpose.msra.mxu0 0.0
          %1445 = vmatprep.subr.mxu0 0.0
          %1446 = vmatpush1.xpose.msra.mxu0 0.0
          %1447 = vmatprep.subr.mxu0 0.0
          %1448 = vmatpush1.xpose.msra.mxu0 0.0
          %1449 = vmatprep.subr.mxu0 0.0
          %1450 = vmatpush1.xpose.msra.mxu0 0.0
          %1451 = vmatprep.subr.mxu0 0.0
          %1452 = vmatpush1.xpose.msra.mxu0 0.0
          %1453 = vmatprep.subr.mxu0 0.0
          %1454 = vmatpush1.xpose.msra.mxu0 0.0
          %1455 = vmatprep.subr.mxu0 0.0
          %1456 = vmatpush1.xpose.msra.mxu0 0.0
          %1457 = vmatprep.subr.mxu0 0.0
          %1458 = vmatpush1.xpose.msra.mxu0 0.0
          %1459 = vmatprep.subr.mxu0 0.0
          %1460 = vmatpush1.xpose.msra.mxu0 0.0
          %1461 = vmatprep.subr.mxu0 0.0
          %1462 = vmatpush1.xpose.msra.mxu0 0.0
          %1463 = vmatprep.subr.mxu0 0.0
          %1464 = vmatpush1.xpose.msra.mxu0 0.0
          %1465 = vmatprep.subr.mxu0 0.0
          %1466 = vmatpush1.xpose.msra.mxu0 0.0
          %1467 = vmatprep.subr.mxu0 0.0
          %1468 = vmatpush1.xpose.msra.mxu0 0.0
          %1469 = vmatprep.subr.mxu0 0.0
          %1470 = vmatpush1.xpose.msra.mxu0 0.0
          %1471 = vmatprep.subr.mxu0 0.0
          %1472 = vmatpush1.xpose.msra.mxu0 0.0
          %1473 = vmatprep.subr.mxu0 0.0
          %1474 = vmatpush1.xpose.msra.mxu0 0.0
          %1475 = vmatprep.subr.mxu0 0.0
          %1476 = vmatpush1.xpose.msra.mxu0 0.0
          %1477 = vmatprep.subr.mxu0 0.0
          %1478 = vmatpush1.xpose.msra.mxu0 0.0
          %1479 = vmatprep.subr.mxu0 0.0
          %1480 = vmatpush1.xpose.msra.mxu0 0.0
          %1481 = vmatprep.subr.mxu0 0.0
          %1482 = vmatpush1.xpose.msra.mxu0 0.0
          %1483 = vmatprep.subr.mxu0 0.0
          %1484 = vmatpush1.xpose.msra.mxu0 0.0
          %1485 = vmatprep.subr.mxu0 0.0
          %1486 = vmatpush1.xpose.msra.mxu0 0.0
          %1487 = vmatprep.subr.mxu0 0.0
          %1488 = vmatpush1.xpose.msra.mxu0 0.0
          %1489 = vmatprep.subr.mxu0 0.0
          %1490 = vmatpush1.xpose.msra.mxu0 0.0
          %1491 = vmatprep.mubr.f32.mxu0 0.0
          %1492 = vmatmul.mubr.f32.gmra.mrb[0].mxu0 %v1423
          %v1493 = vpop.f32.mrb[0].mxu0
          %v1494 = vadd.f32 0.0, %v1493
          %v1495 = vpop.f32.mrb[0].mxu0
          %1496 = vdwg.mxu0
          %v1497 = vsel %vm852, %v1494, -1e+30
          %s1498 = scalar_lea.vmem [#allocation5], 24
          %v1499 = vld [vmem:[%s1498] sm:$0xff]
          %v1500 = vsel %vm827, %v1497, -inf
          %1501 = vmax.xlane.f32.xlu0 %v1500
          %v1502 = vpop.xlane.xlu0 %1501
          %v1503 = vmax.f32 %v1499, %v1502
          %v1504 = vsub.f32 %v1499, %v1503
          %v1505 = vmul.f32 %v1504, 1.442695
          %v1506 = vpow.pop %v1505
          %1508 = vset.pattern.permute.xlu0 0
          %1509 = vperm.xlu0 %1508, %v1503
          %v1510 = vpop.permute.xlu0 %1509
          %v1512 = vsub.f32 %v1497, %v1510
          %v1513 = vmul.f32 %v1512, 1.442695
          %v1514 = vpow.pop %v1513
          %s1515 = scalar_lea.vmem [#allocation6], 24
          %v1516 = vld [vmem:[%s1515] sm:$0xff]
          %v1517 = vmul.f32 %v1506, %v1516
          %v1518 = vsel %vm827, %v1514, 0.0
          %1519 = vadd.xlane.f32.xlu0 %v1518
          %v1520 = vpop.xlane.xlu0 %1519
          %v1521 = vadd.f32 %v1517, %v1520
          %1522 = vst.msk [vmem:[%s1515] sm:$0xff] %vm818, %v1521
          %s1523 = scalar_lea.vmem [#allocation7], 24
          %v1524 = vld [vmem:[%s1523] sm:$0xff]
          %1526 = vset.pattern.permute.xlu0 0
          %1527 = vperm.xlu0 %1526, %v1506
          %v1528 = vpop.permute.xlu0 %1527
          %v1530 = vmul.f32 %v1528, %v1524
          %1531 = vrot.lane.b32.xlu0 %v849, 104
          %v1532 = vpop.permute.xlu0 %1531
          %v1535 = vsel %vm827, %v1514, 0
          %1537 = vmatprep.subr.mxu0 0.0
          %1538 = vmatpush1.msra.mxu0 %v1532
          %1539 = vmatprep.subr.mxu0 0.0
          %1540 = vmatpush1.msra.mxu0 0.0
          %1541 = vmatprep.subr.mxu0 0.0
          %1542 = vmatpush1.msra.mxu0 0.0
          %1543 = vmatprep.subr.mxu0 0.0
          %1544 = vmatpush1.msra.mxu0 0.0
          %1545 = vmatprep.subr.mxu0 0.0
          %1546 = vmatpush1.msra.mxu0 0.0
          %1547 = vmatprep.subr.mxu0 0.0
          %1548 = vmatpush1.msra.mxu0 0.0
          %1549 = vmatprep.subr.mxu0 0.0
          %1550 = vmatpush1.msra.mxu0 0.0
          %1551 = vmatprep.subr.mxu0 0.0
          %1552 = vmatpush1.msra.mxu0 0.0
          %1553 = vmatprep.subr.mxu0 0.0
          %1554 = vmatpush1.msra.mxu0 0.0
          %1555 = vmatprep.subr.mxu0 0.0
          %1556 = vmatpush1.msra.mxu0 0.0
          %1557 = vmatprep.subr.mxu0 0.0
          %1558 = vmatpush1.msra.mxu0 0.0
          %1559 = vmatprep.subr.mxu0 0.0
          %1560 = vmatpush1.msra.mxu0 0.0
          %1561 = vmatprep.subr.mxu0 0.0
          %1562 = vmatpush1.msra.mxu0 0.0
          %1563 = vmatprep.subr.mxu0 0.0
          %1564 = vmatpush1.msra.mxu0 0.0
          %1565 = vmatprep.subr.mxu0 0.0
          %1566 = vmatpush1.msra.mxu0 0.0
          %1567 = vmatprep.subr.mxu0 0.0
          %1568 = vmatpush1.msra.mxu0 0.0
          %1569 = vmatprep.subr.mxu0 0.0
          %1570 = vmatpush1.msra.mxu0 0.0
          %1571 = vmatprep.subr.mxu0 0.0
          %1572 = vmatpush1.msra.mxu0 0.0
          %1573 = vmatprep.subr.mxu0 0.0
          %1574 = vmatpush1.msra.mxu0 0.0
          %1575 = vmatprep.subr.mxu0 0.0
          %1576 = vmatpush1.msra.mxu0 0.0
          %1577 = vmatprep.subr.mxu0 0.0
          %1578 = vmatpush1.msra.mxu0 0.0
          %1579 = vmatprep.subr.mxu0 0.0
          %1580 = vmatpush1.msra.mxu0 0.0
          %1581 = vmatprep.subr.mxu0 0.0
          %1582 = vmatpush1.msra.mxu0 0.0
          %1583 = vmatprep.subr.mxu0 0.0
          %1584 = vmatpush1.msra.mxu0 0.0
          %1585 = vmatprep.subr.mxu0 0.0
          %1586 = vmatpush1.msra.mxu0 0.0
          %1587 = vmatprep.subr.mxu0 0.0
          %1588 = vmatpush1.msra.mxu0 0.0
          %1589 = vmatprep.subr.mxu0 0.0
          %1590 = vmatpush1.msra.mxu0 0.0
          %1591 = vmatprep.subr.mxu0 0.0
          %1592 = vmatpush1.msra.mxu0 0.0
          %1593 = vmatprep.subr.mxu0 0.0
          %1594 = vmatpush1.msra.mxu0 0.0
          %1595 = vmatprep.subr.mxu0 0.0
          %1596 = vmatpush1.msra.mxu0 0.0
          %1597 = vmatprep.subr.mxu0 0.0
          %1598 = vmatpush1.msra.mxu0 0.0
          %1599 = vmatprep.subr.mxu0 0.0
          %1600 = vmatpush1.msra.mxu0 0.0
          %1601 = vmatprep.mubr.f32.mxu0 0.0
          %1602 = vmatmul.mubr.f32.gmra.mrb[0].mxu0 %v1535
          %v1603 = vpop.f32.mrb[0].mxu0
          %v1604 = vadd.f32 0.0, %v1603
          %v1605 = vpop.f32.mrb[0].mxu0
          %1606 = vdwg.mxu0
          %v1607 = vadd.f32 %v1530, %v1604
          %1608 = vst.msk [vmem:[%s1523] sm:$0xff] %vm827, %v1607
          %1609 = vst.msk [vmem:[%s1498] sm:$0xff] %vm818, %v1503
        $region93: #{tpu_custom_call.1} parent=79 // loop_footer
          %s842 = sadd.s32 %s840, 1
        $region94: #{tpu_custom_call.1} parent=79 // loop_footer_branch
          %839 = sbr.rel target = $region90
        $region95: #{tpu_custom_call.1} parent=79 // loop_exit
          _
        %v1610 = vld [vmem:[#allocation7] sm:$0xff]
        %v1611 = vld [vmem:[#allocation6] sm:$0xff]
        %v1612 = vrcp.pop %v1611
        %1614 = vset.pattern.permute.xlu0 0
        %1615 = vperm.xlu0 %1614, %v1612
        %v1616 = vpop.permute.xlu0 %1615
        %v1618 = vmul.f32 %v1610, %v1616
        %s1619 = scalar_lea.vmem [#allocation7], 8
        %v1620 = vld [vmem:[%s1619] sm:$0xff]
        %s1621 = scalar_lea.vmem [#allocation6], 8
        %v1622 = vld [vmem:[%s1621] sm:$0xff]
        %v1623 = vrcp.pop %v1622
        %1625 = vset.pattern.permute.xlu0 0
        %1626 = vperm.xlu0 %1625, %v1623
        %v1627 = vpop.permute.xlu0 %1626
        %v1629 = vmul.f32 %v1620, %v1627
        %s1630 = scalar_lea.vmem [#allocation7], 16
        %v1631 = vld [vmem:[%s1630] sm:$0xff]
        %s1632 = scalar_lea.vmem [#allocation6], 16
        %v1633 = vld [vmem:[%s1632] sm:$0xff]
        %v1634 = vrcp.pop %v1633
        %1636 = vset.pattern.permute.xlu0 0
        %1637 = vperm.xlu0 %1636, %v1634
        %v1638 = vpop.permute.xlu0 %1637
        %v1640 = vmul.f32 %v1631, %v1638
        %s1641 = scalar_lea.vmem [#allocation7], 24
        %v1642 = vld [vmem:[%s1641] sm:$0xff]
        %s1643 = scalar_lea.vmem [#allocation6], 24
        %v1644 = vld [vmem:[%s1643] sm:$0xff]
        %v1645 = vrcp.pop %v1644
        %1647 = vset.pattern.permute.xlu0 0
        %1648 = vperm.xlu0 %1647, %v1645
        %v1649 = vpop.permute.xlu0 %1648
        %v1651 = vmul.f32 %v1642, %v1649
        %1653 = vrot.lane.b32.xlu0 %v1629, 8
        %v1654 = vpop.permute.xlu0 %1653
        %1657 = vrot.lane.b32.xlu0 %v1640, 16
        %v1658 = vpop.permute.xlu0 %1657
        %1661 = vrot.lane.b32.xlu0 %v1651, 24
        %v1662 = vpop.permute.xlu0 %1661
        %v1664 = vsel %vm827, %v1618, %v1654
        %vm1665 = vcmask 130048
        %v1666 = vsel %vm1665, %v1664, %v1658
        %vm1667 = vcmask 195584
        %v1668 = vsel %vm1667, %v1666, %v1662
        %v1669 = vld [vmem:[%s7] sm:$0xff]
        %v1670 = vld [vmem:[%s7 + $0x8] sm:$0xff]
        %v1671 = vld [vmem:[%s7 + $0x10] sm:$0xff]
        %v1672 = vld [vmem:[%s7 + $0x18] sm:$0xff]
        %v1673 = vld [vmem:[%s8] sm:$0x1]
        %v1675 = vlaneseq
        %v1676 = vshrl.u32 %v1675, 7
        %v1677 = vsub.s32 0, %v1676
        %v1678 = vrot.slane %v1673, %v1677
        %v1681 = vsel %vm744, %v1668, 0
        %1683 = vmatprep.subr.mxu0 0.0
        %1684 = vmatpush1.msra.mxu0 %v1669
        %1685 = vmatprep.subr.mxu0 0.0
        %1686 = vmatpush1.msra.mxu0 %v1670
        %1687 = vmatprep.subr.mxu0 0.0
        %1688 = vmatpush1.msra.mxu0 %v1671
        %1689 = vmatprep.subr.mxu0 0.0
        %1690 = vmatpush1.msra.mxu0 %v1672
        %1691 = vmatprep.subr.mxu0 0.0
        %1692 = vmatpush1.msra.mxu0 0.0
        %1693 = vmatprep.subr.mxu0 0.0
        %1694 = vmatpush1.msra.mxu0 0.0
        %1695 = vmatprep.subr.mxu0 0.0
        %1696 = vmatpush1.msra.mxu0 0.0
        %1697 = vmatprep.subr.mxu0 0.0
        %1698 = vmatpush1.msra.mxu0 0.0
        %1699 = vmatprep.subr.mxu0 0.0
        %1700 = vmatpush1.msra.mxu0 0.0
        %1701 = vmatprep.subr.mxu0 0.0
        %1702 = vmatpush1.msra.mxu0 0.0
        %1703 = vmatprep.subr.mxu0 0.0
        %1704 = vmatpush1.msra.mxu0 0.0
        %1705 = vmatprep.subr.mxu0 0.0
        %1706 = vmatpush1.msra.mxu0 0.0
        %1707 = vmatprep.subr.mxu0 0.0
        %1708 = vmatpush1.msra.mxu0 0.0
        %1709 = vmatprep.subr.mxu0 0.0
        %1710 = vmatpush1.msra.mxu0 0.0
        %1711 = vmatprep.subr.mxu0 0.0
        %1712 = vmatpush1.msra.mxu0 0.0
        %1713 = vmatprep.subr.mxu0 0.0
        %1714 = vmatpush1.msra.mxu0 0.0
        %1715 = vmatprep.subr.mxu0 0.0
        %1716 = vmatpush1.msra.mxu0 0.0
        %1717 = vmatprep.subr.mxu0 0.0
        %1718 = vmatpush1.msra.mxu0 0.0
        %1719 = vmatprep.subr.mxu0 0.0
        %1720 = vmatpush1.msra.mxu0 0.0
        %1721 = vmatprep.subr.mxu0 0.0
        %1722 = vmatpush1.msra.mxu0 0.0
        %1723 = vmatprep.subr.mxu0 0.0
        %1724 = vmatpush1.msra.mxu0 0.0
        %1725 = vmatprep.subr.mxu0 0.0
        %1726 = vmatpush1.msra.mxu0 0.0
        %1727 = vmatprep.subr.mxu0 0.0
        %1728 = vmatpush1.msra.mxu0 0.0
        %1729 = vmatprep.subr.mxu0 0.0
        %1730 = vmatpush1.msra.mxu0 0.0
        %1731 = vmatprep.subr.mxu0 0.0
        %1732 = vmatpush1.msra.mxu0 0.0
        %1733 = vmatprep.subr.mxu0 0.0
        %1734 = vmatpush1.msra.mxu0 0.0
        %1735 = vmatprep.subr.mxu0 0.0
        %1736 = vmatpush1.msra.mxu0 0.0
        %1737 = vmatprep.subr.mxu0 0.0
        %1738 = vmatpush1.msra.mxu0 0.0
        %1739 = vmatprep.subr.mxu0 0.0
        %1740 = vmatpush1.msra.mxu0 0.0
        %1741 = vmatprep.subr.mxu0 0.0
        %1742 = vmatpush1.msra.mxu0 0.0
        %1743 = vmatprep.subr.mxu0 0.0
        %1744 = vmatpush1.msra.mxu0 0.0
        %1745 = vmatprep.subr.mxu0 0.0
        %1746 = vmatpush1.msra.mxu0 0.0
        %1747 = vmatprep.mubr.f32.mxu0 0.0
        %1748 = vmatmul.mubr.f32.gmra.mrb[0].mxu0 %v1681
        %v1749 = vpop.f32.mrb[0].mxu0
        %v1750 = vadd.f32 %v1678, %v1749
        %v1751 = vpop.f32.mrb[0].mxu0
        %1752 = vdwg.mxu0
        %v1753 = vadd.f32 %v730, %v1750
        %v1754 = vsel %vm744, %v1753, 0.0
        %1755 = vadd.xlane.f32.xlu0 %v1754
        %v1756 = vpop.xlane.xlu0 %1755
        %v1757 = vrcp.pop 32.0
        %v1758 = vmul.f32 %v1756, %v1757
        %v1759 = vsub.f32 %v1753, %v1758
        %v1760 = vmul.f32 %v1759, %v1759
        %v1761 = vsel %vm744, %v1760, 0.0
        %1762 = vadd.xlane.f32.xlu0 %v1761
        %v1763 = vpop.xlane.xlu0 %1762
        %v1764 = vmul.f32 %v1763, %v1757
        %v1765 = vadd.f32 %v1764, 1e-05
        %v1766 = vrsqrt.pop %v1765
        %v1767 = vmul.f32 %v1759, %v1766
        %v1769 = vlaneseq
        %v1770 = vshrl.u32 %v1769, 7
        %v1771 = vsub.s32 0, %v1770
        %v1772 = vrot.slane %v525, %v1771
        %v1774 = vmul.f32 %v1767, %v1772
        %v1776 = vlaneseq
        %v1777 = vshrl.u32 %v1776, 7
        %v1778 = vsub.s32 0, %v1777
        %v1779 = vrot.slane %v526, %v1778
        %v1781 = vadd.f32 %v1774, %v1779
        %v1782 = vld [vmem:[%s9] sm:$0xff]
        %v1783 = vld [vmem:[%s9 + $0x8] sm:$0xff]
        %v1784 = vld [vmem:[%s9 + $0x10] sm:$0xff]
        %v1785 = vld [vmem:[%s9 + $0x18] sm:$0xff]
        %v1786 = vld [vmem:[%s10] sm:$0x1]
        %v1788 = vlaneseq
        %v1789 = vshrl.u32 %v1788, 7
        %v1790 = vsub.s32 0, %v1789
        %v1791 = vrot.slane %v1786, %v1790
        %v1794 = vsel %vm744, %v1781, 0
        %1796 = vmatprep.subr.mxu0 0.0
        %1797 = vmatpush1.msra.mxu0 %v1782
        %1798 = vmatprep.subr.mxu0 0.0
        %1799 = vmatpush1.msra.mxu0 %v1783
        %1800 = vmatprep.subr.mxu0 0.0
        %1801 = vmatpush1.msra.mxu0 %v1784
        %1802 = vmatprep.subr.mxu0 0.0
        %1803 = vmatpush1.msra.mxu0 %v1785
        %1804 = vmatprep.subr.mxu0 0.0
        %1805 = vmatpush1.msra.mxu0 0.0
        %1806 = vmatprep.subr.mxu0 0.0
        %1807 = vmatpush1.msra.mxu0 0.0
        %1808 = vmatprep.subr.mxu0 0.0
        %1809 = vmatpush1.msra.mxu0 0.0
        %1810 = vmatprep.subr.mxu0 0.0
        %1811 = vmatpush1.msra.mxu0 0.0
        %1812 = vmatprep.subr.mxu0 0.0
        %1813 = vmatpush1.msra.mxu0 0.0
        %1814 = vmatprep.subr.mxu0 0.0
        %1815 = vmatpush1.msra.mxu0 0.0
        %1816 = vmatprep.subr.mxu0 0.0
        %1817 = vmatpush1.msra.mxu0 0.0
        %1818 = vmatprep.subr.mxu0 0.0
        %1819 = vmatpush1.msra.mxu0 0.0
        %1820 = vmatprep.subr.mxu0 0.0
        %1821 = vmatpush1.msra.mxu0 0.0
        %1822 = vmatprep.subr.mxu0 0.0
        %1823 = vmatpush1.msra.mxu0 0.0
        %1824 = vmatprep.subr.mxu0 0.0
        %1825 = vmatpush1.msra.mxu0 0.0
        %1826 = vmatprep.subr.mxu0 0.0
        %1827 = vmatpush1.msra.mxu0 0.0
        %1828 = vmatprep.subr.mxu0 0.0
        %1829 = vmatpush1.msra.mxu0 0.0
        %1830 = vmatprep.subr.mxu0 0.0
        %1831 = vmatpush1.msra.mxu0 0.0
        %1832 = vmatprep.subr.mxu0 0.0
        %1833 = vmatpush1.msra.mxu0 0.0
        %1834 = vmatprep.subr.mxu0 0.0
        %1835 = vmatpush1.msra.mxu0 0.0
        %1836 = vmatprep.subr.mxu0 0.0
        %1837 = vmatpush1.msra.mxu0 0.0
        %1838 = vmatprep.subr.mxu0 0.0
        %1839 = vmatpush1.msra.mxu0 0.0
        %1840 = vmatprep.subr.mxu0 0.0
        %1841 = vmatpush1.msra.mxu0 0.0
        %1842 = vmatprep.subr.mxu0 0.0
        %1843 = vmatpush1.msra.mxu0 0.0
        %1844 = vmatprep.subr.mxu0 0.0
        %1845 = vmatpush1.msra.mxu0 0.0
        %1846 = vmatprep.subr.mxu0 0.0
        %1847 = vmatpush1.msra.mxu0 0.0
        %1848 = vmatprep.subr.mxu0 0.0
        %1849 = vmatpush1.msra.mxu0 0.0
        %1850 = vmatprep.subr.mxu0 0.0
        %1851 = vmatpush1.msra.mxu0 0.0
        %1852 = vmatprep.subr.mxu0 0.0
        %1853 = vmatpush1.msra.mxu0 0.0
        %1854 = vmatprep.subr.mxu0 0.0
        %1855 = vmatpush1.msra.mxu0 0.0
        %1856 = vmatprep.subr.mxu0 0.0
        %1857 = vmatpush1.msra.mxu0 0.0
        %1858 = vmatprep.subr.mxu0 0.0
        %1859 = vmatpush1.msra.mxu0 0.0
        %1860 = vmatprep.mubr.f32.mxu0 0.0
        %1861 = vmatmul.mubr.f32.gmra.mrb[0].mxu0 %v1794
        %v1862 = vpop.f32.mrb[0].mxu0
        %v1863 = vadd.f32 %v1791, %v1862
        %v1864 = vpop.f32.mrb[0].mxu0
        %1865 = vdwg.mxu0
        %v1866 = vmul.f32 %v1863, 0.5
        %v1867 = vmul.f32 %v1863, 0.044715
        %v1868 = vmul.f32 %v1867, %v1863
        %v1869 = vmul.f32 %v1868, %v1863
        %v1870 = vadd.f32 %v1863, %v1869
        %v1871 = vmul.f32 %v1870, 0.7978845
        %v1872 = vtanh.pop %v1871
        %v1873 = vadd.f32 %v1872, 1.0
        %v1874 = vmul.f32 %v1866, %v1873
        %v1875 = vld [vmem:[%s11] sm:$0xff]
        %v1876 = vld [vmem:[%s11 + $0x8] sm:$0xff]
        %v1877 = vld [vmem:[%s11 + $0x10] sm:$0xff]
        %v1878 = vld [vmem:[%s11 + $0x18] sm:$0xff]
        %v1879 = vld [vmem:[%s11 + $0x20] sm:$0xff]
        %v1880 = vld [vmem:[%s11 + $0x28] sm:$0xff]
        %v1881 = vld [vmem:[%s11 + $0x30] sm:$0xff]
        %v1882 = vld [vmem:[%s11 + $0x38] sm:$0xff]
        %v1883 = vld [vmem:[%s11 + $0x40] sm:$0xff]
        %v1884 = vld [vmem:[%s11 + $0x48] sm:$0xff]
        %v1885 = vld [vmem:[%s11 + $0x50] sm:$0xff]
        %v1886 = vld [vmem:[%s11 + $0x58] sm:$0xff]
        %v1887 = vld [vmem:[%s11 + $0x60] sm:$0xff]
        %v1888 = vld [vmem:[%s11 + $0x68] sm:$0xff]
        %v1889 = vld [vmem:[%s11 + $0x70] sm:$0xff]
        %v1890 = vld [vmem:[%s11 + $0x78] sm:$0xff]
        %v1891 = vld [vmem:[%s12] sm:$0x1]
        %v1893 = vlaneseq
        %v1894 = vshrl.u32 %v1893, 7
        %v1895 = vsub.s32 0, %v1894
        %v1896 = vrot.slane %v1891, %v1895
        %1898 = vmatprep.subr.mxu0 0.0
        %1899 = vmatpush1.msra.mxu0 %v1875
        %1900 = vmatprep.subr.mxu0 0.0
        %1901 = vmatpush1.msra.mxu0 %v1876
        %1902 = vmatprep.subr.mxu0 0.0
        %1903 = vmatpush1.msra.mxu0 %v1877
        %1904 = vmatprep.subr.mxu0 0.0
        %1905 = vmatpush1.msra.mxu0 %v1878
        %1906 = vmatprep.subr.mxu0 0.0
        %1907 = vmatpush1.msra.mxu0 %v1879
        %1908 = vmatprep.subr.mxu0 0.0
        %1909 = vmatpush1.msra.mxu0 %v1880
        %1910 = vmatprep.subr.mxu0 0.0
        %1911 = vmatpush1.msra.mxu0 %v1881
        %1912 = vmatprep.subr.mxu0 0.0
        %1913 = vmatpush1.msra.mxu0 %v1882
        %1914 = vmatprep.subr.mxu0 0.0
        %1915 = vmatpush1.msra.mxu0 %v1883
        %1916 = vmatprep.subr.mxu0 0.0
        %1917 = vmatpush1.msra.mxu0 %v1884
        %1918 = vmatprep.subr.mxu0 0.0
        %1919 = vmatpush1.msra.mxu0 %v1885
        %1920 = vmatprep.subr.mxu0 0.0
        %1921 = vmatpush1.msra.mxu0 %v1886
        %1922 = vmatprep.subr.mxu0 0.0
        %1923 = vmatpush1.msra.mxu0 %v1887
        %1924 = vmatprep.subr.mxu0 0.0
        %1925 = vmatpush1.msra.mxu0 %v1888
        %1926 = vmatprep.subr.mxu0 0.0
        %1927 = vmatpush1.msra.mxu0 %v1889
        %1928 = vmatprep.subr.mxu0 0.0
        %1929 = vmatpush1.msra.mxu0 %v1890
        %1930 = vmatprep.subr.mxu0 0.0
        %1931 = vmatpush1.msra.mxu0 0.0
        %1932 = vmatprep.subr.mxu0 0.0
        %1933 = vmatpush1.msra.mxu0 0.0
        %1934 = vmatprep.subr.mxu0 0.0
        %1935 = vmatpush1.msra.mxu0 0.0
        %1936 = vmatprep.subr.mxu0 0.0
        %1937 = vmatpush1.msra.mxu0 0.0
        %1938 = vmatprep.subr.mxu0 0.0
        %1939 = vmatpush1.msra.mxu0 0.0
        %1940 = vmatprep.subr.mxu0 0.0
        %1941 = vmatpush1.msra.mxu0 0.0
        %1942 = vmatprep.subr.mxu0 0.0
        %1943 = vmatpush1.msra.mxu0 0.0
        %1944 = vmatprep.subr.mxu0 0.0
        %1945 = vmatpush1.msra.mxu0 0.0
        %1946 = vmatprep.subr.mxu0 0.0
        %1947 = vmatpush1.msra.mxu0 0.0
        %1948 = vmatprep.subr.mxu0 0.0
        %1949 = vmatpush1.msra.mxu0 0.0
        %1950 = vmatprep.subr.mxu0 0.0
        %1951 = vmatpush1.msra.mxu0 0.0
        %1952 = vmatprep.subr.mxu0 0.0
        %1953 = vmatpush1.msra.mxu0 0.0
        %1954 = vmatprep.subr.mxu0 0.0
        %1955 = vmatpush1.msra.mxu0 0.0
        %1956 = vmatprep.subr.mxu0 0.0
        %1957 = vmatpush1.msra.mxu0 0.0
        %1958 = vmatprep.subr.mxu0 0.0
        %1959 = vmatpush1.msra.mxu0 0.0
        %1960 = vmatprep.subr.mxu0 0.0
        %1961 = vmatpush1.msra.mxu0 0.0
        %1962 = vmatprep.mubr.f32.mxu0 0.0
        %1963 = vmatmul.mubr.f32.gmra.mrb[0].mxu0 %v1874
        %v1964 = vpop.f32.mrb[0].mxu0
        %v1965 = vadd.f32 %v1896, %v1964
        %v1966 = vpop.f32.mrb[0].mxu0
        %1967 = vdwg.mxu0
        %v1968 = vadd.f32 %v1753, %v1965
        %1969 = vst.msk [vmem:[%s523] sm:$0xff] %vm744, %v1968
        %s1970 = sand.u32 %s374, 1
        %s1971 = scalar_lea.sflag [#allocation10], %s1970
        %s1972 = sand.u32 %s374, 1
        %s1973 = smul.addr %s1972, 8
        %s1974 = scalar_lea.vmem [#allocation11], %s1973
        // Predicated region
        $region96: #{tpu_custom_call.1} parent=79 // pred_check
          %p1975 = pneg %p384
        $region97: #{tpu_custom_call.1} parent=79 // pred_check_branch
          %1977 = sbr.rel (%p1975) target = $region99
        $region98: #{tpu_custom_call.1} parent=79 // pred_region
          %s1979 = ssub.s32 128, 128
          %1980 = vsyncadd %s1971, %s1979
          %s1981 = sadd.s32 %s37, %s36
          %s1982 = smul.addr %s1981, 128
          %s1983 = scalar_lea.hbm %s15, %s1982
          %s1985 = sshll.u32 %s1974, 4
          %s1986 = int_to_ptr.vmem [resolvable:$true] %s1985
          %1988 = dma.vmem_to_hbm [thread:$0]  %s1986, 128, %s1983, %s1971
        $region99: #{tpu_custom_call.1} parent=79 // pred_fallthru
          _
      $region80: #{tpu_custom_call.1} parent=5 // pred_fallthru
        _
      %p1989 = scmp.le.s32.totalorder 2, %s27
      // Predicated region
      $region100: #{tpu_custom_call.1} parent=5 // pred_check
        %p1990 = pneg %p1989
      $region101: #{tpu_custom_call.1} parent=5 // pred_check_branch
        %1992 = sbr.rel (%p1990) target = $region103
      $region102: #{tpu_custom_call.1} parent=5 // pred_region
        %s1993 = ssub.s32 %s27, 2
        // Predicated region
        $region104: #{tpu_custom_call.1} parent=102 // pred_check
          %p1994 = pneg %p390
        $region105: #{tpu_custom_call.1} parent=102 // pred_check_branch
          %1996 = sbr.rel (%p1994) target = $region107
        $region106: #{tpu_custom_call.1} parent=102 // pred_region
          %s1997 = sand.u32 %s375, 1
          %s1998 = scalar_lea.sflag [#allocation10], %s1997
          %s1999 = sand.u32 %s375, 1
          %s2000 = smul.addr %s1999, 8
          %s2001 = scalar_lea.vmem [#allocation11], %s2000
          %2002 = dma.done %s1998, 128
        $region107: #{tpu_custom_call.1} parent=102 // pred_fallthru
          _
      $region103: #{tpu_custom_call.1} parent=5 // pred_fallthru
        _
    $region6: #{tpu_custom_call.1} parent=1 // loop_footer
      %s31 = sadd.s32 1, %s27
    $region7: #{tpu_custom_call.1} parent=1 // loop_footer_branch
      %26 = sbr.rel target = $region3
    $region8: #{tpu_custom_call.1} parent=1 // loop_exit
      _
    %2003 = vsyncpa [#allocation9], 1
    %s2004 = scalar_lea.sflag [#allocation9], 1
    %2005 = vsyncpa %s2004, 1
    %2006 = vsyncpa [#allocation10], 1
    %s2007 = scalar_lea.sflag [#allocation10], 1
    %2008 = vsyncpa %s2007, 1

</llo_original>
